<compile_context>
chip_gen: v5e
topology: v5e:2x2
jax: 0.10.0
libtpu: 0.0.40
codegen_flags: <defaults>
</compile_context>

<pallas_src>
import math
from functools import partial

import jax
import jax.numpy as jnp
from jax import lax
from jax.experimental import pallas as pl
from jax.experimental.pallas import tpu as pltpu

# ----------------------------- module config --------------------------------
IN_CH = 4
OUT_CH = 8
KH = KW = 3
STRIDE = 1
DILATION = 1
PAD_TYPE = "both"


def compute_pad_size(kernel_size, dilation, stride, pad_type):
    """Mirrors padertorch compute_pad_size (total pad = dilation*(k-1))."""
    if pad_type is None:
        return 0, 0
    total = dilation * (kernel_size - 1)
    if pad_type == "both":
        return total // 2, int(math.ceil(total / 2))
    if pad_type == "front":
        return total, 0
    if pad_type == "end":
        return 0, total
    raise ValueError(pad_type)


# ------------------------------ Pallas kernel --------------------------------
def _gated_conv_kernel(x_ref, w_ref, b_ref, o_ref, *, KH, KW, Ho, Wo, Cin, Cout):
    """One batch element per grid step.

    x_ref : (1, Cin, Hp, Wp)     padded input, channel-major NCHW (bf16)
    w_ref : (2*Cout, KH*KW*Cin)  packed [conv; gate_conv] weights (bf16),
                                 inner row order (kh, kw, cin)
    b_ref : (2*Cout, 1)          packed [conv; gate_conv] biases (f32)
    o_ref : (1, Cout, Ho*Wo)     output, spatial on the lane axis (f32)
    """
    x = x_ref[0]                                            # (Cin, Hp, Wp)

    # im2col RHS built once: rows ordered (kh, kw, cin) to match the packed
    # weight layout.  Static slices; assumes stride=1, dilation=1 (asserted in
    # the wrapper).  Each slice is reshaped so the full spatial extent lands on
    # the lane axis of the matmul.
    cols = []
    for kh in range(KH):
        for kw in range(KW):
            cols.append(x[:, kh:kh + Ho, kw:kw + Wo].reshape(Cin, Ho * Wo))
    rhs = jnp.concatenate(cols, axis=0)                     # (KH*KW*Cin, Ho*Wo)

    # Single fused MXU matmul for conv + gate_conv, f32 accumulation.
    acc = jnp.dot(w_ref[...], rhs,
                  preferred_element_type=jnp.float32)       # (2*Cout, Ho*Wo)
    acc = acc + b_ref[...]                                  # bias broadcast (f32)

    y = acc[:Cout]                                          # main conv
    g = acc[Cout:]                                          # gate conv
    out = jnp.maximum(y, 0.0) * jax.nn.sigmoid(g)           # relu(y)*sigmoid(g)
    o_ref[0] = out.astype(o_ref.dtype)                      # lane-dense store


# ------------------------------ wrapper --------------------------------------
@jax.jit
def conv2d_gated_relu(x_nchw, w_oihw, b, wg_oihw, bg):
    """Pallas implementation of _Conv.forward (Conv2d, gated, relu, eval mode)."""
    B, Cin, H, W = x_nchw.shape
    assert Cin == IN_CH
    Cout = w_oihw.shape[0]
    # Kernel slicing hardcodes stride=1 / dilation=1.
    assert STRIDE == 1 and DILATION == 1, (STRIDE, DILATION)

    fp_h, ep_h = compute_pad_size(KH, DILATION, STRIDE, PAD_TYPE)
    fp_w, ep_w = compute_pad_size(KW, DILATION, STRIDE, PAD_TYPE)

    # Zero-pad spatial dims ('both') directly in NCHW; bf16 for the MXU.
    xp = jnp.pad(x_nchw, ((0, 0), (0, 0), (fp_h, ep_h), (fp_w, ep_w)))
    xp = xp.astype(jnp.bfloat16)
    Hp, Wp = xp.shape[2], xp.shape[3]
    Ho = (Hp - DILATION * (KH - 1) - 1) // STRIDE + 1
    Wo = (Wp - DILATION * (KW - 1) - 1) // STRIDE + 1

    # Pack weights: OIHW -> (O, KH, KW, Cin) -> (O, KH*KW*Cin), then stack
    # main and gate along the output-channel axis.  Biases -> (2*Cout, 1) f32.
    w_flat = jnp.transpose(w_oihw, (0, 2, 3, 1)).reshape(Cout, KH * KW * Cin)
    wg_flat = jnp.transpose(wg_oihw, (0, 2, 3, 1)).reshape(Cout, KH * KW * Cin)
    w_packed = jnp.concatenate([w_flat, wg_flat], axis=0).astype(jnp.bfloat16)
    b_packed = jnp.concatenate([b, bg], axis=0).reshape(2 * Cout, 1)
    b_packed = b_packed.astype(jnp.float32)

    kernel = partial(_gated_conv_kernel,
                     KH=KH, KW=KW, Ho=Ho, Wo=Wo, Cin=Cin, Cout=Cout)

    # TODO(synk): for realistic spectrogram sizes (H*W >> 1e4), add an
    # Ho-tile grid axis with a halo-aware index_map and set vmem_limit_bytes
    # so double-buffered tiles fit v7x's 64 MiB VMEM.
    y_flat = pl.pallas_call(
        kernel,
        out_shape=jax.ShapeDtypeStruct((B, Cout, Ho * Wo), jnp.float32),
        grid=(B,),
        in_specs=[
            pl.BlockSpec((1, Cin, Hp, Wp), lambda bb: (bb, 0, 0, 0)),
            pl.BlockSpec((2 * Cout, KH * KW * Cin), lambda bb: (0, 0)),
            pl.BlockSpec((2 * Cout, 1), lambda bb: (0, 0)),
        ],
        out_specs=pl.BlockSpec((1, Cout, Ho * Wo), lambda bb: (bb, 0, 0)),
        compiler_params=pltpu.CompilerParams(
            dimension_semantics=("parallel",)),
    )(xp, w_packed, b_packed)

    # Free (contiguous) reshape to the PyTorch NCHW output convention.
    return y_flat.reshape(B, Cout, Ho, Wo)


def forward(x_nchw, params, sequence_lengths=None):
    """Mirrors _Conv.forward signature/return: (y, sequence_lengths)."""
    # TODO(synk): dropout is training-only (self.training and dropout>0); eval mode here.
    y = conv2d_gated_relu(x_nchw, params["w"], params["b"],
                          params["wg"], params["bg"])
    # pad_type='both', stride=1 -> sequence lengths unchanged
    return y, sequence_lengths


# ------------------------------ reference ------------------------------------
def reference(x_nchw, params, compute_dtype=jnp.float32):
    """XLA reference.  compute_dtype=bf16 mirrors the kernel's MXU precision."""
    fp_h, ep_h = compute_pad_size(KH, DILATION, STRIDE, PAD_TYPE)
    fp_w, ep_w = compute_pad_size(KW, DILATION, STRIDE, PAD_TYPE)
    xp = jnp.pad(x_nchw, ((0, 0), (0, 0), (fp_h, ep_h), (fp_w, ep_w)))
    xp = xp.astype(compute_dtype)
    dn = lax.conv_dimension_numbers(xp.shape, params["w"].shape,
                                    ("NCHW", "OIHW", "NCHW"))
    conv = lambda w: lax.conv_general_dilated(
        xp, w.astype(compute_dtype), (STRIDE, STRIDE), "VALID",
        rhs_dilation=(DILATION, DILATION), dimension_numbers=dn,
        preferred_element_type=jnp.float32)
    y = conv(params["w"]) + params["b"][None, :, None, None]
    g = conv(params["wg"]) + params["bg"][None, :, None, None]
    return jax.nn.relu(y) * jax.nn.sigmoid(g)


# ------------------------------ main ------------------------------------------
if __name__ == "__main__":
    key = jax.random.PRNGKey(0)
    k_x, k_w, k_b, k_wg, k_bg = jax.random.split(key, 5)

    B, H, W = 2, 16, 16
    x = jax.random.normal(k_x, (B, IN_CH, H, W), jnp.float32)

    # deterministic synthetic params (PyTorch-like uniform(-bound, bound))
    fan_in = IN_CH * KH * KW
    bound = 1.0 / math.sqrt(fan_in)
    params = {
        "w": jax.random.uniform(k_w, (OUT_CH, IN_CH, KH, KW), jnp.float32,
                                -bound, bound),
        "b": jax.random.uniform(k_b, (OUT_CH,), jnp.float32, -bound, bound),
        "wg": jax.random.uniform(k_wg, (OUT_CH, IN_CH, KH, KW), jnp.float32,
                                 -bound, bound),
        "bg": jax.random.uniform(k_bg, (OUT_CH,), jnp.float32, -bound, bound),
    }

    y, seq_len = forward(x, params, sequence_lengths=None)
    y = jax.block_until_ready(y)
    assert y.shape == (B, OUT_CH, H, W), y.shape

    # Tight check against a reference with matching bf16 MXU-input precision
    # (both accumulate in f32, so differences are summation-order level).
    y_ref_bf16 = reference(x, params, compute_dtype=jnp.bfloat16)
    err = float(jnp.max(jnp.abs(y - y_ref_bf16)))
    assert jnp.allclose(y, y_ref_bf16, atol=5e-3, rtol=5e-3), err

    # Loose sanity check against the full-f32 reference (bf16 cast error only).
    y_ref_f32 = reference(x, params, compute_dtype=jnp.float32)
    err32 = float(jnp.max(jnp.abs(y - y_ref_f32)))
    assert jnp.allclose(y, y_ref_f32, atol=5e-2, rtol=5e-2), err32

    print("KERNEL_OK")
</pallas_src>

<mosaic_0001>
module attributes {stable_mosaic.version = 11 : i64} {
  func.func @_gated_conv_kernel(%arg0: i32, %arg1: memref<1x4x18x18xbf16, #tpu.memory_space<vmem>>, %arg2: memref<16x36xbf16, #tpu.memory_space<vmem>>, %arg3: memref<16x1xf32, #tpu.memory_space<vmem>>, %arg4: memref<1x8x256xf32, #tpu.memory_space<vmem>>) attributes {dimension_semantics = [#tpu.dimension_semantics<parallel>], iteration_bounds = array<i64: 2>, scalar_prefetch = 0 : i64, scratch_operands = 0 : i64, tpu.core_type = #tpu.core_type<tc>, window_params = [{transform_indices = @transform_0, window_bounds = array<i64: 1, 4, 18, 18>}, {pipeline_mode = #tpu.pipeline_mode<synchronous>, transform_indices = @transform_1, window_bounds = array<i64: 16, 36>}, {pipeline_mode = #tpu.pipeline_mode<synchronous>, transform_indices = @transform_2, window_bounds = array<i64: 16, 1>}, {transform_indices = @transform_3, window_bounds = array<i64: 1, 8, 256>}]} {
    %c0 = arith.constant 0 : index
    %c0_0 = arith.constant 0 : index
    %c0_1 = arith.constant 0 : index
    %c0_2 = arith.constant 0 : index
    %0 = vector.load %arg1[%c0, %c0_0, %c0_1, %c0_2] : memref<1x4x18x18xbf16, #tpu.memory_space<vmem>>, vector<1x4x18x18xbf16>
    %1 = vector.shape_cast %0 : vector<1x4x18x18xbf16> to vector<4x18x18xbf16>
    %2 = vector.extract_strided_slice %1 {offsets = [0, 0, 0], sizes = [4, 16, 16], strides = [1, 1, 1]} : vector<4x18x18xbf16> to vector<4x16x16xbf16>
    %3 = vector.shape_cast %2 : vector<4x16x16xbf16> to vector<4x256xbf16>
    %4 = vector.extract_strided_slice %1 {offsets = [0, 0, 1], sizes = [4, 16, 16], strides = [1, 1, 1]} : vector<4x18x18xbf16> to vector<4x16x16xbf16>
    %5 = vector.shape_cast %4 : vector<4x16x16xbf16> to vector<4x256xbf16>
    %6 = vector.extract_strided_slice %1 {offsets = [0, 0, 2], sizes = [4, 16, 16], strides = [1, 1, 1]} : vector<4x18x18xbf16> to vector<4x16x16xbf16>
    %7 = vector.shape_cast %6 : vector<4x16x16xbf16> to vector<4x256xbf16>
    %8 = vector.extract_strided_slice %1 {offsets = [0, 1, 0], sizes = [4, 16, 16], strides = [1, 1, 1]} : vector<4x18x18xbf16> to vector<4x16x16xbf16>
    %9 = vector.shape_cast %8 : vector<4x16x16xbf16> to vector<4x256xbf16>
    %10 = vector.extract_strided_slice %1 {offsets = [0, 1, 1], sizes = [4, 16, 16], strides = [1, 1, 1]} : vector<4x18x18xbf16> to vector<4x16x16xbf16>
    %11 = vector.shape_cast %10 : vector<4x16x16xbf16> to vector<4x256xbf16>
    %12 = vector.extract_strided_slice %1 {offsets = [0, 1, 2], sizes = [4, 16, 16], strides = [1, 1, 1]} : vector<4x18x18xbf16> to vector<4x16x16xbf16>
    %13 = vector.shape_cast %12 : vector<4x16x16xbf16> to vector<4x256xbf16>
    %14 = vector.extract_strided_slice %1 {offsets = [0, 2, 0], sizes = [4, 16, 16], strides = [1, 1, 1]} : vector<4x18x18xbf16> to vector<4x16x16xbf16>
    %15 = vector.shape_cast %14 : vector<4x16x16xbf16> to vector<4x256xbf16>
    %16 = vector.extract_strided_slice %1 {offsets = [0, 2, 1], sizes = [4, 16, 16], strides = [1, 1, 1]} : vector<4x18x18xbf16> to vector<4x16x16xbf16>
    %17 = vector.shape_cast %16 : vector<4x16x16xbf16> to vector<4x256xbf16>
    %18 = vector.extract_strided_slice %1 {offsets = [0, 2, 2], sizes = [4, 16, 16], strides = [1, 1, 1]} : vector<4x18x18xbf16> to vector<4x16x16xbf16>
    %19 = vector.shape_cast %18 : vector<4x16x16xbf16> to vector<4x256xbf16>
    %20 = tpu.concatenate %3, %5, %7, %9, %11, %13, %15, %17, %19 in 0 : vector<4x256xbf16>, vector<4x256xbf16>, vector<4x256xbf16>, vector<4x256xbf16>, vector<4x256xbf16>, vector<4x256xbf16>, vector<4x256xbf16>, vector<4x256xbf16>, vector<4x256xbf16> -> vector<36x256xbf16>
    %c0_3 = arith.constant 0 : index
    %c0_4 = arith.constant 0 : index
    %21 = vector.load %arg2[%c0_3, %c0_4] : memref<16x36xbf16, #tpu.memory_space<vmem>>, vector<16x36xbf16>
    %cst = arith.constant dense<0.000000e+00> : vector<16x256xf32>
    %22 = tpu.matmul %21, %20, %cst {dimension_numbers = #tpu.dot_dimension_numbers<[1], [0], [0], [1], [0, 0, 1, 1], [], []>} : vector<16x36xbf16>, vector<36x256xbf16>, vector<16x256xf32> -> vector<16x256xf32>
    %c0_5 = arith.constant 0 : index
    %c0_6 = arith.constant 0 : index
    %23 = vector.load %arg3[%c0_5, %c0_6] : memref<16x1xf32, #tpu.memory_space<vmem>>, vector<16x1xf32>
    %24 = vector.broadcast %23 : vector<16x1xf32> to vector<16x256xf32>
    %25 = arith.addf %22, %24 : vector<16x256xf32>
    %26 = vector.extract_strided_slice %25 {offsets = [0, 0], sizes = [8, 256], strides = [1, 1]} : vector<16x256xf32> to vector<8x256xf32>
    %27 = vector.extract_strided_slice %25 {offsets = [8, 0], sizes = [8, 256], strides = [1, 1]} : vector<16x256xf32> to vector<8x256xf32>
    %cst_7 = arith.constant 0.000000e+00 : f32
    %28 = vector.broadcast %cst_7 : f32 to vector<8x256xf32>
    %29 = arith.maximumf %26, %28 : vector<8x256xf32>
    %30 = arith.negf %27 : vector<8x256xf32>
    %31 = math.exp %30 : vector<8x256xf32>
    %cst_8 = arith.constant 1.000000e+00 : f32
    %32 = vector.broadcast %cst_8 : f32 to vector<8x256xf32>
    %33 = arith.addf %32, %31 : vector<8x256xf32>
    %34 = arith.divf %32, %33 : vector<8x256xf32>
    %35 = arith.mulf %29, %34 : vector<8x256xf32>
    %c0_9 = arith.constant 0 : index
    %c0_10 = arith.constant 0 : index
    %c0_11 = arith.constant 0 : index
    %36 = vector.load %arg4[%c0_9, %c0_10, %c0_11] : memref<1x8x256xf32, #tpu.memory_space<vmem>>, vector<1x8x256xf32>
    %37 = vector.shape_cast %36 : vector<1x8x256xf32> to vector<8x256xf32>
    %38 = vector.shape_cast %35 : vector<8x256xf32> to vector<1x8x256xf32>
    tpu.vector_store %arg4[%c0_9, %c0_10, %c0_11], %38 {strides = array<i32>} : memref<1x8x256xf32, #tpu.memory_space<vmem>>, vector<1x8x256xf32>,
    return
  }
  func.func @transform_0(%arg0: i32) -> (i32, i32, i32, i32) {
    %c0_i32 = arith.constant 0 : i32
    %c0_i32_0 = arith.constant 0 : i32
    %c0_i32_1 = arith.constant 0 : i32
    %c0_i32_2 = arith.constant 0 : i32
    return %arg0, %c0_i32, %c0_i32_0, %c0_i32_1 : i32, i32, i32, i32
  }
  func.func @transform_1(%arg0: i32) -> (i32, i32) {
    %c0_i32 = arith.constant 0 : i32
    %c0_i32_0 = arith.constant 0 : i32
    %c0_i32_1 = arith.constant 0 : i32
    return %c0_i32, %c0_i32_0 : i32, i32
  }
  func.func @transform_2(%arg0: i32) -> (i32, i32) {
    %c0_i32 = arith.constant 0 : i32
    %c0_i32_0 = arith.constant 0 : i32
    %c0_i32_1 = arith.constant 0 : i32
    return %c0_i32, %c0_i32_0 : i32, i32
  }
  func.func @transform_3(%arg0: i32) -> (i32, i32, i32) {
    %c0_i32 = arith.constant 0 : i32
    %c0_i32_0 = arith.constant 0 : i32
    %c0_i32_1 = arith.constant 0 : i32
    return %arg0, %c0_i32, %c0_i32_0 : i32, i32, i32
  }
}

</mosaic_0001>

<llo_original>
// kernel: conv2d_gated_relu.1
$region0: #{conv2d_gated_relu.1}
  #allocation0 [shape = 'u32[]', space=smem, size = 0x4, offset = 0x4, fixed_abs, tag = 'smem constant byte address 0x4 - core index']
  #allocation1 [shape = 'u32[72,128]{1,0:T(1,128)}', space=vmem, size = 0x9000, scoped, tag = 'internal scratch']
  %s0 = inlined_call_operand.vmem [shape: bf16[2,4,18,18], index: 0, kind: input, shape index: {}]
  %s1 = inlined_call_operand.vmem [shape: bf16[16,36], index: 1, kind: input, shape index: {}]
  %s2 = inlined_call_operand.vmem [shape: f32[16,1], index: 2, kind: input, shape index: {}]
  %s3 = inlined_call_operand.vmem [shape: f32[2,8,256], index: 3, kind: output, shape index: {}]
  %s4 = sld [smem:[#allocation0]]
  $region45: #{conv2d_gated_relu.1} parent=0
    _
  %s6 = ssub.s32 1, %s4
  %s7 = scalar_select 0, %s6, %s4
  loop: start=0, step=1, limit=4
  $region2: #{conv2d_gated_relu.1} parent=0 // loop_pre_header
    _
  $region3: #{conv2d_gated_relu.1} parent=0 // loop_header
    %s9 = sphi 0, %s13
    %p10 = scmp.ge.s32.totalorder %s9, 4
    %s19 = sphi 0, %s21
    %s22 = sphi 0, %s19
    %s23 = sphi 0, %s22
    %s39 = sphi 0, %s23
    %s43 = sphi 0, %s43
    %s45 = sphi 0, %s43
    %s46 = sphi 0, %s45
    %s60 = sphi 0, %s46
    %s64 = sphi 0, %s64
    %s66 = sphi 0, %s64
    %s67 = sphi 0, %s66
    %s81 = sphi 0, %s67
    %s87 = sphi 0, %s89
    %s90 = sphi 0, %s87
    %s91 = sphi 0, %s90
    %s107 = sphi 0, %s91
  $region4: #{conv2d_gated_relu.1} parent=0 // loop_header_branch
    %12 = sbr.rel (%p10) target = $region8
  $region5: #{conv2d_gated_relu.1} parent=0 // loop_body
    %s14 = ssub.s32 %s9, 1
    %s15 = ssub.s32 %s9, 2
    %s16 = sadd.s32 %s9, 1
    %s17 = ssub.s32 %s9, %s16
    %p18 = scmp.eq.s32.totalorder %s17, 0
    %s20 = sadd.s32 %s19, 1
    %s21 = scalar_select %p18, %s19, %s20
    %p24 = pneg %p18
    %p25 = scmp.eq.s32.totalorder %s9, 1
    %p26 = por %p24, %p25
    %p27 = scmp.ne.s32.totalorder %s19, %s22
    %p28 = scmp.eq.s32.totalorder %s9, 0
    %p29 = por %p27, %p28
    %p30 = scmp.ne.s32.totalorder %s19, %s22
    %p31 = scmp.eq.s32.totalorder %s14, 1
    %p32 = por %p30, %p31
    %p33 = scmp.ne.s32.totalorder %s22, %s23
    %p34 = scmp.eq.s32.totalorder %s14, 0
    %p35 = por %p33, %p34
    %p36 = scmp.ne.s32.totalorder %s22, %s23
    %p37 = scmp.eq.s32.totalorder %s15, 1
    %p38 = por %p36, %p37
    %p40 = scmp.ne.s32.totalorder %s23, %s39
    %p41 = scmp.eq.s32.totalorder %s15, 0
    %p42 = por %p40, %p41
    %s44 = sadd.s32 %s43, 1
    %p47 = scmp.eq.s32.totalorder %s9, 1
    %p48 = scmp.ne.s32.totalorder %s43, %s45
    %p49 = scmp.eq.s32.totalorder %s9, 0
    %p50 = por %p48, %p49
    %p51 = scmp.ne.s32.totalorder %s43, %s45
    %p52 = scmp.eq.s32.totalorder %s14, 1
    %p53 = por %p51, %p52
    %p54 = scmp.ne.s32.totalorder %s45, %s46
    %p55 = scmp.eq.s32.totalorder %s14, 0
    %p56 = por %p54, %p55
    %p57 = scmp.ne.s32.totalorder %s45, %s46
    %p58 = scmp.eq.s32.totalorder %s15, 1
    %p59 = por %p57, %p58
    %p61 = scmp.ne.s32.totalorder %s46, %s60
    %p62 = scmp.eq.s32.totalorder %s15, 0
    %p63 = por %p61, %p62
    %s65 = sadd.s32 %s64, 1
    %p68 = scmp.eq.s32.totalorder %s9, 1
    %p69 = scmp.ne.s32.totalorder %s64, %s66
    %p70 = scmp.eq.s32.totalorder %s9, 0
    %p71 = por %p69, %p70
    %p72 = scmp.ne.s32.totalorder %s64, %s66
    %p73 = scmp.eq.s32.totalorder %s14, 1
    %p74 = por %p72, %p73
    %p75 = scmp.ne.s32.totalorder %s66, %s67
    %p76 = scmp.eq.s32.totalorder %s14, 0
    %p77 = por %p75, %p76
    %p78 = scmp.ne.s32.totalorder %s66, %s67
    %p79 = scmp.eq.s32.totalorder %s15, 1
    %p80 = por %p78, %p79
    %p82 = scmp.ne.s32.totalorder %s67, %s81
    %p83 = scmp.eq.s32.totalorder %s15, 0
    %p84 = por %p82, %p83
    %s85 = ssub.s32 %s9, %s16
    %p86 = scmp.eq.s32.totalorder %s85, 0
    %s88 = sadd.s32 %s87, 1
    %s89 = scalar_select %p86, %s87, %s88
    %p92 = pneg %p86
    %p93 = scmp.eq.s32.totalorder %s9, 1
    %p94 = por %p92, %p93
    %p95 = scmp.ne.s32.totalorder %s87, %s90
    %p96 = scmp.eq.s32.totalorder %s9, 0
    %p97 = por %p95, %p96
    %p98 = scmp.ne.s32.totalorder %s87, %s90
    %p99 = scmp.eq.s32.totalorder %s14, 1
    %p100 = por %p98, %p99
    %p101 = scmp.ne.s32.totalorder %s90, %s91
    %p102 = scmp.eq.s32.totalorder %s14, 0
    %p103 = por %p101, %p102
    %p104 = scmp.ne.s32.totalorder %s90, %s91
    %p105 = scmp.eq.s32.totalorder %s15, 1
    %p106 = por %p104, %p105
    %p108 = scmp.ne.s32.totalorder %s91, %s107
    %p109 = scmp.eq.s32.totalorder %s15, 0
    %p110 = por %p108, %p109
    %p111 = scmp.le.s32.totalorder 1, %s9
    %p112 = scmp.lt.s32.totalorder %s9, 3
    %p113 = pnand %p111, %p112
    %p114 = pneg %p113
    // Predicated region
    $region9: #{conv2d_gated_relu.1} parent=5 // pred_check
      _
    $region10: #{conv2d_gated_relu.1} parent=5 // pred_check_branch
      %116 = sbr.rel (%p113) target = $region12
    $region11: #{conv2d_gated_relu.1} parent=5 // pred_region
      %s117 = ssub.s32 %s9, 1
      // Predicated region
      $region13: #{conv2d_gated_relu.1} parent=11 // pred_check
        %p118 = pneg %p56
      $region14: #{conv2d_gated_relu.1} parent=11 // pred_check_branch
        %120 = sbr.rel (%p118) target = $region16
      $region15: #{conv2d_gated_relu.1} parent=11 // pred_region
        _
      $region16: #{conv2d_gated_relu.1} parent=11 // pred_fallthru
        _
      // Predicated region
      $region17: #{conv2d_gated_relu.1} parent=11 // pred_check
        %p121 = pneg %p77
      $region18: #{conv2d_gated_relu.1} parent=11 // pred_check_branch
        %123 = sbr.rel (%p121) target = $region20
      $region19: #{conv2d_gated_relu.1} parent=11 // pred_region
        _
      $region20: #{conv2d_gated_relu.1} parent=11 // pred_fallthru
        _
    $region12: #{conv2d_gated_relu.1} parent=5 // pred_fallthru
      _
    %p124 = scmp.lt.s32.totalorder %s9, 2
    // Predicated region
    $region21: #{conv2d_gated_relu.1} parent=5 // pred_check
      %p125 = pneg %p124
    $region22: #{conv2d_gated_relu.1} parent=5 // pred_check_branch
      %127 = sbr.rel (%p125) target = $region24
    $region23: #{conv2d_gated_relu.1} parent=5 // pred_region
      // Predicated region
      $region25: #{conv2d_gated_relu.1} parent=23 // pred_check
        %p128 = pneg %p29
      $region26: #{conv2d_gated_relu.1} parent=23 // pred_check_branch
        %130 = sbr.rel (%p128) target = $region28
      $region27: #{conv2d_gated_relu.1} parent=23 // pred_region
        %p131 = scmp.lt.s32.totalorder %s9, 1
        %s132 = scalar_select %p131, %s9, 1
        %s133 = smul.addr %s132, 12
        %s134 = smul.addr %s133, 4
        %s135 = scalar_lea.vmem %s0, %s134
      $region28: #{conv2d_gated_relu.1} parent=23 // pred_fallthru
        _
    $region24: #{conv2d_gated_relu.1} parent=5 // pred_fallthru
      _
    %p136 = scmp.le.s32.totalorder 1, %s9
    %p137 = scmp.lt.s32.totalorder %s9, 3
    %p138 = pnand %p136, %p137
    %p139 = pneg %p138
    // Predicated region
    $region29: #{conv2d_gated_relu.1} parent=5 // pred_check
      _
    $region30: #{conv2d_gated_relu.1} parent=5 // pred_check_branch
      %141 = sbr.rel (%p138) target = $region32
    $region31: #{conv2d_gated_relu.1} parent=5 // pred_region
      %s142 = ssub.s32 %s9, 1
      %p143 = scmp.lt.s32.totalorder %s14, 1
      %s144 = scalar_select %p143, %s14, 1
      %s145 = smul.addr %s144, 12
      %s146 = smul.addr %s145, 4
      %s147 = scalar_lea.vmem %s0, %s146
      %p148 = pneg %p35
      %p149 = pneg %p32
      %p150 = pneg %p56
      %p151 = pneg %p53
      %p152 = pneg %p77
      %p153 = pneg %p74
      %p154 = pneg %p103
      %p155 = pneg %p100
      %p156 = scmp.lt.s32.totalorder %s14, 1
      %s157 = scalar_select %p156, %s14, 1
      %s158 = smul.addr %s157, 2
      %s159 = smul.addr %s158, 8
      %s160 = scalar_lea.vmem %s3, %s159
      %p161 = scmp.lt.s32.totalorder %s14, 1
      %s162 = scalar_select %p161, %s14, 1
      %s163 = smul.addr %s162, 12
      %s164 = smul.addr %s163, 4
      %s165 = scalar_lea.vmem %s0, %s164
      %p166 = scmp.lt.s32.totalorder %s14, 1
      %s167 = scalar_select %p166, %s14, 1
      %s168 = smul.addr %s167, 2
      %s169 = smul.addr %s168, 8
      %s170 = scalar_lea.vmem %s3, %s169
      %v172 = vld [vmem:[%s165] sm:$0xf]
      %v173 = vld [vmem:[%s165 + $0x4] sm:$0xf]
      %v174 = vld [vmem:[%s165 + $0x8] sm:$0x1]
      %v175 = vld [vmem:[%s165 + $0xc] sm:$0xf]
      %v176 = vld [vmem:[%s165 + $0x10] sm:$0xf]
      %v177 = vld [vmem:[%s165 + $0x14] sm:$0x1]
      %v178 = vld [vmem:[%s165 + $0x18] sm:$0xf]
      %v179 = vld [vmem:[%s165 + $0x1c] sm:$0xf]
      %v180 = vld [vmem:[%s165 + $0x20] sm:$0x1]
      %v181 = vld [vmem:[%s165 + $0x24] sm:$0xf]
      %v182 = vld [vmem:[%s165 + $0x28] sm:$0xf]
      %v183 = vld [vmem:[%s165 + $0x2c] sm:$0x1]
      %v186 = vpack.i.b16 %v175, %v172
      %v187 = vshrl.u32 %v172, 16
      %v188 = vshrl.u32 %v175, 16
      %v189 = vpack.i.b16 %v188, %v187
      %v192 = vpack.i.b16 %v181, %v178
      %v193 = vshrl.u32 %v178, 16
      %v194 = vshrl.u32 %v181, 16
      %v195 = vpack.i.b16 %v194, %v193
      %v198 = vpack.i.b16 %v176, %v173
      %v199 = vshrl.u32 %v173, 16
      %v200 = vshrl.u32 %v176, 16
      %v201 = vpack.i.b16 %v200, %v199
      %v204 = vpack.i.b16 %v182, %v179
      %v205 = vshrl.u32 %v179, 16
      %v206 = vshrl.u32 %v182, 16
      %v207 = vpack.i.b16 %v206, %v205
      %v210 = vunpack.c.l.s4 1983009808
      %v211 = vunpack.c.0.s8 %v210
      %v212 = vperm.slane %v186, %v211
      %v215 = vunpack.c.l.s4 1983009808
      %v216 = vunpack.c.0.s8 %v215
      %v217 = vperm.slane %v192, %v216
      %v218 = vrot.slane %v217, 4
      %vm219 = vcmask 1047556
      %v220 = vsel %vm219, %v218, %v212
      %v221 = vrot.slane %v212, 4
      %v222 = vsel %vm219, %v217, %v221
      %v224 = vunpack.c.l.s4 1934713408
      %v225 = vunpack.c.0.s8 %v224
      %v226 = vperm.slane %v220, %v225
      %v228 = vunpack.c.l.s4 1934713408
      %v229 = vunpack.c.0.s8 %v228
      %v230 = vperm.slane %v222, %v229
      %v231 = vrot.slane %v226, 4
      %v232 = vsel %vm219, 0, %v231
      %v233 = vrot.slane %v230, 4
      %v234 = vsel %vm219, 0, %v233
      %v237 = vunpack.c.l.s4 1983009808
      %v238 = vunpack.c.0.s8 %v237
      %v239 = vperm.slane %v189, %v238
      %v242 = vunpack.c.l.s4 1983009808
      %v243 = vunpack.c.0.s8 %v242
      %v244 = vperm.slane %v195, %v243
      %v245 = vrot.slane %v244, 4
      %v246 = vsel %vm219, %v245, %v239
      %v247 = vrot.slane %v239, 4
      %v248 = vsel %vm219, %v244, %v247
      %v250 = vunpack.c.l.s4 1934713408
      %v251 = vunpack.c.0.s8 %v250
      %v252 = vperm.slane %v246, %v251
      %v254 = vunpack.c.l.s4 1934713408
      %v255 = vunpack.c.0.s8 %v254
      %v256 = vperm.slane %v248, %v255
      %v257 = vrot.slane %v252, 4
      %v258 = vsel %vm219, 0, %v257
      %v259 = vrot.slane %v256, 4
      %v260 = vsel %vm219, 0, %v259
      %v263 = vunpack.c.l.s4 1983009808
      %v264 = vunpack.c.0.s8 %v263
      %v265 = vperm.slane %v198, %v264
      %v268 = vunpack.c.l.s4 1983009808
      %v269 = vunpack.c.0.s8 %v268
      %v270 = vperm.slane %v204, %v269
      %v271 = vrot.slane %v270, 4
      %v272 = vsel %vm219, %v271, %v265
      %v273 = vrot.slane %v265, 4
      %v274 = vsel %vm219, %v270, %v273
      %v276 = vunpack.c.l.s4 1934713408
      %v277 = vunpack.c.0.s8 %v276
      %v278 = vperm.slane %v272, %v277
      %v280 = vunpack.c.l.s4 1934713408
      %v281 = vunpack.c.0.s8 %v280
      %v282 = vperm.slane %v274, %v281
      %v283 = vrot.slane %v278, 4
      %v284 = vsel %vm219, 0, %v283
      %v285 = vrot.slane %v282, 4
      %v286 = vsel %vm219, 0, %v285
      %v289 = vunpack.c.l.s4 1983009808
      %v290 = vunpack.c.0.s8 %v289
      %v291 = vperm.slane %v201, %v290
      %v294 = vunpack.c.l.s4 1983009808
      %v295 = vunpack.c.0.s8 %v294
      %v296 = vperm.slane %v207, %v295
      %v297 = vrot.slane %v296, 4
      %v298 = vsel %vm219, %v297, %v291
      %v299 = vrot.slane %v291, 4
      %v300 = vsel %vm219, %v296, %v299
      %v302 = vunpack.c.l.s4 1934713408
      %v303 = vunpack.c.0.s8 %v302
      %v304 = vperm.slane %v298, %v303
      %v306 = vunpack.c.l.s4 1934713408
      %v307 = vunpack.c.0.s8 %v306
      %v308 = vperm.slane %v300, %v307
      %v309 = vrot.slane %v304, 4
      %v310 = vsel %vm219, 0, %v309
      %v311 = vrot.slane %v308, 4
      %v312 = vsel %vm219, 0, %v311
      %v314 = vunpack.c.l.b16 %v252
      %v315 = vpack.c.b16 %v314, %v314
      %316 = vrot.lane.b32.xlu0 %v315, 16
      %v317 = vpop.permute.xlu0 %316
      %v319 = vunpack.c.l.b16 %v232
      %v320 = vpack.c.b16 %v319, %v319
      %321 = vrot.lane.b32.xlu0 %v320, 32
      %v322 = vpop.permute.xlu0 %321
      %v324 = vunpack.c.l.b16 %v258
      %v325 = vpack.c.b16 %v324, %v324
      %326 = vrot.lane.b32.xlu0 %v325, 48
      %v327 = vpop.permute.xlu0 %326
      %v329 = vunpack.c.l.b16 %v230
      %v330 = vpack.c.b16 %v329, %v329
      %331 = vrot.lane.b32.xlu0 %v330, 64
      %v332 = vpop.permute.xlu0 %331
      %v334 = vunpack.c.l.b16 %v256
      %v335 = vpack.c.b16 %v334, %v334
      %336 = vrot.lane.b32.xlu0 %v335, 80
      %v337 = vpop.permute.xlu0 %336
      %v339 = vunpack.c.l.b16 %v234
      %v340 = vpack.c.b16 %v339, %v339
      %341 = vrot.lane.b32.xlu0 %v340, 96
      %v342 = vpop.permute.xlu0 %341
      %v344 = vunpack.c.l.b16 %v260
      %v345 = vpack.c.b16 %v344, %v344
      %346 = vrot.lane.b32.xlu0 %v345, 112
      %v347 = vpop.permute.xlu0 %346
      %v349 = vunpack.c.l.b16 %v304
      %v350 = vpack.c.b16 %v349, %v349
      %351 = vrot.lane.b32.xlu0 %v350, 16
      %v352 = vpop.permute.xlu0 %351
      %v354 = vunpack.c.l.b16 %v284
      %v355 = vpack.c.b16 %v354, %v354
      %356 = vrot.lane.b32.xlu0 %v355, 32
      %v357 = vpop.permute.xlu0 %356
      %v359 = vunpack.c.l.b16 %v310
      %v360 = vpack.c.b16 %v359, %v359
      %361 = vrot.lane.b32.xlu0 %v360, 48
      %v362 = vpop.permute.xlu0 %361
      %v364 = vunpack.c.l.b16 %v282
      %v365 = vpack.c.b16 %v364, %v364
      %366 = vrot.lane.b32.xlu0 %v365, 64
      %v367 = vpop.permute.xlu0 %366
      %v369 = vunpack.c.l.b16 %v308
      %v370 = vpack.c.b16 %v369, %v369
      %371 = vrot.lane.b32.xlu0 %v370, 80
      %v372 = vpop.permute.xlu0 %371
      %v374 = vunpack.c.l.b16 %v286
      %v375 = vpack.c.b16 %v374, %v374
      %376 = vrot.lane.b32.xlu0 %v375, 96
      %v377 = vpop.permute.xlu0 %376
      %v379 = vunpack.c.l.b16 %v312
      %v380 = vpack.c.b16 %v379, %v379
      %381 = vrot.lane.b32.xlu0 %v380, 112
      %v382 = vpop.permute.xlu0 %381
      %vm383 = vcmask 130048
      %v386 = vsel %vm383, %v226, %v317
      %vm387 = vcmask 261120
      %v389 = vsel %vm387, %v386, %v322
      %vm390 = vcmask 392192
      %v392 = vsel %vm390, %v389, %v327
      %vm393 = vcmask 523264
      %v395 = vsel %vm393, %v392, %v332
      %vm396 = vcmask 654336
      %v398 = vsel %vm396, %v395, %v337
      %vm399 = vcmask 785408
      %v401 = vsel %vm399, %v398, %v342
      %vm402 = vcmask 916480
      %v404 = vsel %vm402, %v401, %v347
      %v407 = vsel %vm383, %v278, %v352
      %v409 = vsel %vm387, %v407, %v357
      %v411 = vsel %vm390, %v409, %v362
      %v413 = vsel %vm393, %v411, %v367
      %v415 = vsel %vm396, %v413, %v372
      %v417 = vsel %vm399, %v415, %v377
      %v419 = vsel %vm402, %v417, %v382
      %428 = vrot.lane.b32.xlu0 %v172, 127
      %v429 = vpop.permute.xlu0 %428
      %430 = vrot.lane.b32.xlu0 %v173, 127
      %v431 = vpop.permute.xlu0 %430
      %432 = vrot.lane.b32.xlu0 %v175, 127
      %v433 = vpop.permute.xlu0 %432
      %434 = vrot.lane.b32.xlu0 %v176, 127
      %v435 = vpop.permute.xlu0 %434
      %436 = vrot.lane.b32.xlu0 %v178, 127
      %v437 = vpop.permute.xlu0 %436
      %438 = vrot.lane.b32.xlu0 %v179, 127
      %v439 = vpop.permute.xlu0 %438
      %440 = vrot.lane.b32.xlu0 %v181, 127
      %v441 = vpop.permute.xlu0 %440
      %442 = vrot.lane.b32.xlu0 %v182, 127
      %v443 = vpop.permute.xlu0 %442
      %v446 = vpack.i.b16 %v433, %v429
      %v447 = vshrl.u32 %v429, 16
      %v448 = vshrl.u32 %v433, 16
      %v449 = vpack.i.b16 %v448, %v447
      %v452 = vpack.i.b16 %v441, %v437
      %v453 = vshrl.u32 %v437, 16
      %v454 = vshrl.u32 %v441, 16
      %v455 = vpack.i.b16 %v454, %v453
      %v458 = vpack.i.b16 %v435, %v431
      %v459 = vshrl.u32 %v431, 16
      %v460 = vshrl.u32 %v435, 16
      %v461 = vpack.i.b16 %v460, %v459
      %v464 = vpack.i.b16 %v443, %v439
      %v465 = vshrl.u32 %v439, 16
      %v466 = vshrl.u32 %v443, 16
      %v467 = vpack.i.b16 %v466, %v465
      %v470 = vunpack.c.l.s4 1983009808
      %v471 = vunpack.c.0.s8 %v470
      %v472 = vperm.slane %v446, %v471
      %v475 = vunpack.c.l.s4 1983009808
      %v476 = vunpack.c.0.s8 %v475
      %v477 = vperm.slane %v452, %v476
      %v478 = vrot.slane %v477, 4
      %v479 = vsel %vm219, %v478, %v472
      %v480 = vrot.slane %v472, 4
      %v481 = vsel %vm219, %v477, %v480
      %v483 = vunpack.c.l.s4 1934713408
      %v484 = vunpack.c.0.s8 %v483
      %v485 = vperm.slane %v479, %v484
      %v487 = vunpack.c.l.s4 1934713408
      %v488 = vunpack.c.0.s8 %v487
      %v489 = vperm.slane %v481, %v488
      %v490 = vrot.slane %v485, 4
      %v491 = vsel %vm219, 0, %v490
      %v492 = vrot.slane %v489, 4
      %v493 = vsel %vm219, 0, %v492
      %v496 = vunpack.c.l.s4 1983009808
      %v497 = vunpack.c.0.s8 %v496
      %v498 = vperm.slane %v449, %v497
      %v501 = vunpack.c.l.s4 1983009808
      %v502 = vunpack.c.0.s8 %v501
      %v503 = vperm.slane %v455, %v502
      %v504 = vrot.slane %v503, 4
      %v505 = vsel %vm219, %v504, %v498
      %v506 = vrot.slane %v498, 4
      %v507 = vsel %vm219, %v503, %v506
      %v509 = vunpack.c.l.s4 1934713408
      %v510 = vunpack.c.0.s8 %v509
      %v511 = vperm.slane %v505, %v510
      %v513 = vunpack.c.l.s4 1934713408
      %v514 = vunpack.c.0.s8 %v513
      %v515 = vperm.slane %v507, %v514
      %v516 = vrot.slane %v511, 4
      %v517 = vsel %vm219, 0, %v516
      %v518 = vrot.slane %v515, 4
      %v519 = vsel %vm219, 0, %v518
      %v522 = vunpack.c.l.s4 1983009808
      %v523 = vunpack.c.0.s8 %v522
      %v524 = vperm.slane %v458, %v523
      %v527 = vunpack.c.l.s4 1983009808
      %v528 = vunpack.c.0.s8 %v527
      %v529 = vperm.slane %v464, %v528
      %v530 = vrot.slane %v529, 4
      %v531 = vsel %vm219, %v530, %v524
      %v532 = vrot.slane %v524, 4
      %v533 = vsel %vm219, %v529, %v532
      %v535 = vunpack.c.l.s4 1934713408
      %v536 = vunpack.c.0.s8 %v535
      %v537 = vperm.slane %v531, %v536
      %v539 = vunpack.c.l.s4 1934713408
      %v540 = vunpack.c.0.s8 %v539
      %v541 = vperm.slane %v533, %v540
      %v542 = vrot.slane %v537, 4
      %v543 = vsel %vm219, 0, %v542
      %v544 = vrot.slane %v541, 4
      %v545 = vsel %vm219, 0, %v544
      %v548 = vunpack.c.l.s4 1983009808
      %v549 = vunpack.c.0.s8 %v548
      %v550 = vperm.slane %v461, %v549
      %v553 = vunpack.c.l.s4 1983009808
      %v554 = vunpack.c.0.s8 %v553
      %v555 = vperm.slane %v467, %v554
      %v556 = vrot.slane %v555, 4
      %v557 = vsel %vm219, %v556, %v550
      %v558 = vrot.slane %v550, 4
      %v559 = vsel %vm219, %v555, %v558
      %v561 = vunpack.c.l.s4 1934713408
      %v562 = vunpack.c.0.s8 %v561
      %v563 = vperm.slane %v557, %v562
      %v565 = vunpack.c.l.s4 1934713408
      %v566 = vunpack.c.0.s8 %v565
      %v567 = vperm.slane %v559, %v566
      %v568 = vrot.slane %v563, 4
      %v569 = vsel %vm219, 0, %v568
      %v570 = vrot.slane %v567, 4
      %v571 = vsel %vm219, 0, %v570
      %v573 = vunpack.c.l.b16 %v511
      %v574 = vpack.c.b16 %v573, %v573
      %575 = vrot.lane.b32.xlu0 %v574, 16
      %v576 = vpop.permute.xlu0 %575
      %v578 = vunpack.c.l.b16 %v491
      %v579 = vpack.c.b16 %v578, %v578
      %580 = vrot.lane.b32.xlu0 %v579, 32
      %v581 = vpop.permute.xlu0 %580
      %v583 = vunpack.c.l.b16 %v517
      %v584 = vpack.c.b16 %v583, %v583
      %585 = vrot.lane.b32.xlu0 %v584, 48
      %v586 = vpop.permute.xlu0 %585
      %v588 = vunpack.c.l.b16 %v489
      %v589 = vpack.c.b16 %v588, %v588
      %590 = vrot.lane.b32.xlu0 %v589, 64
      %v591 = vpop.permute.xlu0 %590
      %v593 = vunpack.c.l.b16 %v515
      %v594 = vpack.c.b16 %v593, %v593
      %595 = vrot.lane.b32.xlu0 %v594, 80
      %v596 = vpop.permute.xlu0 %595
      %v598 = vunpack.c.l.b16 %v493
      %v599 = vpack.c.b16 %v598, %v598
      %600 = vrot.lane.b32.xlu0 %v599, 96
      %v601 = vpop.permute.xlu0 %600
      %v603 = vunpack.c.l.b16 %v519
      %v604 = vpack.c.b16 %v603, %v603
      %605 = vrot.lane.b32.xlu0 %v604, 112
      %v606 = vpop.permute.xlu0 %605
      %v608 = vunpack.c.l.b16 %v563
      %v609 = vpack.c.b16 %v608, %v608
      %610 = vrot.lane.b32.xlu0 %v609, 16
      %v611 = vpop.permute.xlu0 %610
      %v613 = vunpack.c.l.b16 %v543
      %v614 = vpack.c.b16 %v613, %v613
      %615 = vrot.lane.b32.xlu0 %v614, 32
      %v616 = vpop.permute.xlu0 %615
      %v618 = vunpack.c.l.b16 %v569
      %v619 = vpack.c.b16 %v618, %v618
      %620 = vrot.lane.b32.xlu0 %v619, 48
      %v621 = vpop.permute.xlu0 %620
      %v623 = vunpack.c.l.b16 %v541
      %v624 = vpack.c.b16 %v623, %v623
      %625 = vrot.lane.b32.xlu0 %v624, 64
      %v626 = vpop.permute.xlu0 %625
      %v628 = vunpack.c.l.b16 %v567
      %v629 = vpack.c.b16 %v628, %v628
      %630 = vrot.lane.b32.xlu0 %v629, 80
      %v631 = vpop.permute.xlu0 %630
      %v633 = vunpack.c.l.b16 %v545
      %v634 = vpack.c.b16 %v633, %v633
      %635 = vrot.lane.b32.xlu0 %v634, 96
      %v636 = vpop.permute.xlu0 %635
      %v638 = vunpack.c.l.b16 %v571
      %v639 = vpack.c.b16 %v638, %v638
      %640 = vrot.lane.b32.xlu0 %v639, 112
      %v641 = vpop.permute.xlu0 %640
      %v644 = vsel %vm383, %v485, %v576
      %v646 = vsel %vm387, %v644, %v581
      %v648 = vsel %vm390, %v646, %v586
      %v650 = vsel %vm393, %v648, %v591
      %v652 = vsel %vm396, %v650, %v596
      %v654 = vsel %vm399, %v652, %v601
      %v656 = vsel %vm402, %v654, %v606
      %v659 = vsel %vm383, %v537, %v611
      %v661 = vsel %vm387, %v659, %v616
      %v663 = vsel %vm390, %v661, %v621
      %v665 = vsel %vm393, %v663, %v626
      %v667 = vsel %vm396, %v665, %v631
      %v669 = vsel %vm399, %v667, %v636
      %v671 = vsel %vm402, %v669, %v641
      %672 = vrot.lane.b32.xlu0 %v172, 126
      %v673 = vpop.permute.xlu0 %672
      %674 = vrot.lane.b32.xlu0 %v173, 126
      %v675 = vpop.permute.xlu0 %674
      %676 = vrot.lane.b32.xlu0 %v175, 126
      %v677 = vpop.permute.xlu0 %676
      %678 = vrot.lane.b32.xlu0 %v176, 126
      %v679 = vpop.permute.xlu0 %678
      %680 = vrot.lane.b32.xlu0 %v178, 126
      %v681 = vpop.permute.xlu0 %680
      %682 = vrot.lane.b32.xlu0 %v179, 126
      %v683 = vpop.permute.xlu0 %682
      %684 = vrot.lane.b32.xlu0 %v181, 126
      %v685 = vpop.permute.xlu0 %684
      %686 = vrot.lane.b32.xlu0 %v182, 126
      %v687 = vpop.permute.xlu0 %686
      %v690 = vpack.i.b16 %v677, %v673
      %v691 = vshrl.u32 %v673, 16
      %v692 = vshrl.u32 %v677, 16
      %v693 = vpack.i.b16 %v692, %v691
      %v696 = vpack.i.b16 %v685, %v681
      %v697 = vshrl.u32 %v681, 16
      %v698 = vshrl.u32 %v685, 16
      %v699 = vpack.i.b16 %v698, %v697
      %v702 = vpack.i.b16 %v679, %v675
      %v703 = vshrl.u32 %v675, 16
      %v704 = vshrl.u32 %v679, 16
      %v705 = vpack.i.b16 %v704, %v703
      %v708 = vpack.i.b16 %v687, %v683
      %v709 = vshrl.u32 %v683, 16
      %v710 = vshrl.u32 %v687, 16
      %v711 = vpack.i.b16 %v710, %v709
      %v714 = vunpack.c.l.s4 1983009808
      %v715 = vunpack.c.0.s8 %v714
      %v716 = vperm.slane %v690, %v715
      %v719 = vunpack.c.l.s4 1983009808
      %v720 = vunpack.c.0.s8 %v719
      %v721 = vperm.slane %v696, %v720
      %v722 = vrot.slane %v721, 4
      %v723 = vsel %vm219, %v722, %v716
      %v724 = vrot.slane %v716, 4
      %v725 = vsel %vm219, %v721, %v724
      %v727 = vunpack.c.l.s4 1934713408
      %v728 = vunpack.c.0.s8 %v727
      %v729 = vperm.slane %v723, %v728
      %v731 = vunpack.c.l.s4 1934713408
      %v732 = vunpack.c.0.s8 %v731
      %v733 = vperm.slane %v725, %v732
      %v734 = vrot.slane %v729, 4
      %v735 = vsel %vm219, 0, %v734
      %v736 = vrot.slane %v733, 4
      %v737 = vsel %vm219, 0, %v736
      %v740 = vunpack.c.l.s4 1983009808
      %v741 = vunpack.c.0.s8 %v740
      %v742 = vperm.slane %v693, %v741
      %v745 = vunpack.c.l.s4 1983009808
      %v746 = vunpack.c.0.s8 %v745
      %v747 = vperm.slane %v699, %v746
      %v748 = vrot.slane %v747, 4
      %v749 = vsel %vm219, %v748, %v742
      %v750 = vrot.slane %v742, 4
      %v751 = vsel %vm219, %v747, %v750
      %v753 = vunpack.c.l.s4 1934713408
      %v754 = vunpack.c.0.s8 %v753
      %v755 = vperm.slane %v749, %v754
      %v757 = vunpack.c.l.s4 1934713408
      %v758 = vunpack.c.0.s8 %v757
      %v759 = vperm.slane %v751, %v758
      %v760 = vrot.slane %v755, 4
      %v761 = vsel %vm219, 0, %v760
      %v762 = vrot.slane %v759, 4
      %v763 = vsel %vm219, 0, %v762
      %v766 = vunpack.c.l.s4 1983009808
      %v767 = vunpack.c.0.s8 %v766
      %v768 = vperm.slane %v702, %v767
      %v771 = vunpack.c.l.s4 1983009808
      %v772 = vunpack.c.0.s8 %v771
      %v773 = vperm.slane %v708, %v772
      %v774 = vrot.slane %v773, 4
      %v775 = vsel %vm219, %v774, %v768
      %v776 = vrot.slane %v768, 4
      %v777 = vsel %vm219, %v773, %v776
      %v779 = vunpack.c.l.s4 1934713408
      %v780 = vunpack.c.0.s8 %v779
      %v781 = vperm.slane %v775, %v780
      %v783 = vunpack.c.l.s4 1934713408
      %v784 = vunpack.c.0.s8 %v783
      %v785 = vperm.slane %v777, %v784
      %v786 = vrot.slane %v781, 4
      %v787 = vsel %vm219, 0, %v786
      %v788 = vrot.slane %v785, 4
      %v789 = vsel %vm219, 0, %v788
      %v792 = vunpack.c.l.s4 1983009808
      %v793 = vunpack.c.0.s8 %v792
      %v794 = vperm.slane %v705, %v793
      %v797 = vunpack.c.l.s4 1983009808
      %v798 = vunpack.c.0.s8 %v797
      %v799 = vperm.slane %v711, %v798
      %v800 = vrot.slane %v799, 4
      %v801 = vsel %vm219, %v800, %v794
      %v802 = vrot.slane %v794, 4
      %v803 = vsel %vm219, %v799, %v802
      %v805 = vunpack.c.l.s4 1934713408
      %v806 = vunpack.c.0.s8 %v805
      %v807 = vperm.slane %v801, %v806
      %v809 = vunpack.c.l.s4 1934713408
      %v810 = vunpack.c.0.s8 %v809
      %v811 = vperm.slane %v803, %v810
      %v812 = vrot.slane %v807, 4
      %v813 = vsel %vm219, 0, %v812
      %v814 = vrot.slane %v811, 4
      %v815 = vsel %vm219, 0, %v814
      %v817 = vunpack.c.l.b16 %v755
      %v818 = vpack.c.b16 %v817, %v817
      %819 = vrot.lane.b32.xlu0 %v818, 16
      %v820 = vpop.permute.xlu0 %819
      %v822 = vunpack.c.l.b16 %v735
      %v823 = vpack.c.b16 %v822, %v822
      %824 = vrot.lane.b32.xlu0 %v823, 32
      %v825 = vpop.permute.xlu0 %824
      %v827 = vunpack.c.l.b16 %v761
      %v828 = vpack.c.b16 %v827, %v827
      %829 = vrot.lane.b32.xlu0 %v828, 48
      %v830 = vpop.permute.xlu0 %829
      %v832 = vunpack.c.l.b16 %v733
      %v833 = vpack.c.b16 %v832, %v832
      %834 = vrot.lane.b32.xlu0 %v833, 64
      %v835 = vpop.permute.xlu0 %834
      %v837 = vunpack.c.l.b16 %v759
      %v838 = vpack.c.b16 %v837, %v837
      %839 = vrot.lane.b32.xlu0 %v838, 80
      %v840 = vpop.permute.xlu0 %839
      %v842 = vunpack.c.l.b16 %v737
      %v843 = vpack.c.b16 %v842, %v842
      %844 = vrot.lane.b32.xlu0 %v843, 96
      %v845 = vpop.permute.xlu0 %844
      %v847 = vunpack.c.l.b16 %v763
      %v848 = vpack.c.b16 %v847, %v847
      %849 = vrot.lane.b32.xlu0 %v848, 112
      %v850 = vpop.permute.xlu0 %849
      %v852 = vunpack.c.l.b16 %v807
      %v853 = vpack.c.b16 %v852, %v852
      %854 = vrot.lane.b32.xlu0 %v853, 16
      %v855 = vpop.permute.xlu0 %854
      %v857 = vunpack.c.l.b16 %v787
      %v858 = vpack.c.b16 %v857, %v857
      %859 = vrot.lane.b32.xlu0 %v858, 32
      %v860 = vpop.permute.xlu0 %859
      %v862 = vunpack.c.l.b16 %v813
      %v863 = vpack.c.b16 %v862, %v862
      %864 = vrot.lane.b32.xlu0 %v863, 48
      %v865 = vpop.permute.xlu0 %864
      %v867 = vunpack.c.l.b16 %v785
      %v868 = vpack.c.b16 %v867, %v867
      %869 = vrot.lane.b32.xlu0 %v868, 64
      %v870 = vpop.permute.xlu0 %869
      %v872 = vunpack.c.l.b16 %v811
      %v873 = vpack.c.b16 %v872, %v872
      %874 = vrot.lane.b32.xlu0 %v873, 80
      %v875 = vpop.permute.xlu0 %874
      %v877 = vunpack.c.l.b16 %v789
      %v878 = vpack.c.b16 %v877, %v877
      %879 = vrot.lane.b32.xlu0 %v878, 96
      %v880 = vpop.permute.xlu0 %879
      %v882 = vunpack.c.l.b16 %v815
      %v883 = vpack.c.b16 %v882, %v882
      %884 = vrot.lane.b32.xlu0 %v883, 112
      %v885 = vpop.permute.xlu0 %884
      %v888 = vsel %vm383, %v729, %v820
      %v890 = vsel %vm387, %v888, %v825
      %v892 = vsel %vm390, %v890, %v830
      %v894 = vsel %vm393, %v892, %v835
      %v896 = vsel %vm396, %v894, %v840
      %v898 = vsel %vm399, %v896, %v845
      %v900 = vsel %vm402, %v898, %v850
      %v903 = vsel %vm383, %v781, %v855
      %v905 = vsel %vm387, %v903, %v860
      %v907 = vsel %vm390, %v905, %v865
      %v909 = vsel %vm393, %v907, %v870
      %v911 = vsel %vm396, %v909, %v875
      %v913 = vsel %vm399, %v911, %v880
      %v915 = vsel %vm402, %v913, %v885
      %vm916 = vsmask.f32 3328
      %vm917 = vsmask.f32 7440
      %vm918 = vmor %vm916, %vm917
      %v920 = vrot.slane %v187, 4
      %v921 = vshll.u32 %v172, 16
      %v923 = vrot.slane %v921, 5
      %v924 = vor.u32 %v920, %v923
      %v925 = vrot.slane %v924, 4
      %v926 = vshll.u32 %v173, 16
      %v928 = vrot.slane %v926, 5
      %v929 = vsel %vm918, %v925, %v928
      %v931 = vrot.slane %v199, 4
      %v932 = vor.u32 %v931, %v928
      %v933 = vrot.slane %v932, 4
      %v935 = vshll.u32 %v174, 16
      %v937 = vrot.slane %v935, 5
      %v938 = vsel %vm918, %v933, %v937
      %v940 = vrot.slane %v188, 4
      %v941 = vshll.u32 %v175, 16
      %v943 = vrot.slane %v941, 5
      %v944 = vor.u32 %v940, %v943
      %v945 = vrot.slane %v944, 4
      %v946 = vshll.u32 %v176, 16
      %v948 = vrot.slane %v946, 5
      %v949 = vsel %vm918, %v945, %v948
      %v951 = vrot.slane %v200, 4
      %v952 = vor.u32 %v951, %v948
      %v953 = vrot.slane %v952, 4
      %v955 = vshll.u32 %v177, 16
      %v957 = vrot.slane %v955, 5
      %v958 = vsel %vm918, %v953, %v957
      %v960 = vrot.slane %v193, 4
      %v961 = vshll.u32 %v178, 16
      %v963 = vrot.slane %v961, 5
      %v964 = vor.u32 %v960, %v963
      %v965 = vrot.slane %v964, 4
      %v966 = vshll.u32 %v179, 16
      %v968 = vrot.slane %v966, 5
      %v969 = vsel %vm918, %v965, %v968
      %v971 = vrot.slane %v205, 4
      %v972 = vor.u32 %v971, %v968
      %v973 = vrot.slane %v972, 4
      %v975 = vshll.u32 %v180, 16
      %v977 = vrot.slane %v975, 5
      %v978 = vsel %vm918, %v973, %v977
      %v980 = vrot.slane %v194, 4
      %v981 = vshll.u32 %v181, 16
      %v983 = vrot.slane %v981, 5
      %v984 = vor.u32 %v980, %v983
      %v985 = vrot.slane %v984, 4
      %v986 = vshll.u32 %v182, 16
      %v988 = vrot.slane %v986, 5
      %v989 = vsel %vm918, %v985, %v988
      %v991 = vrot.slane %v206, 4
      %v992 = vor.u32 %v991, %v988
      %v993 = vrot.slane %v992, 4
      %v995 = vshll.u32 %v183, 16
      %v997 = vrot.slane %v995, 5
      %v998 = vsel %vm918, %v993, %v997
      %v1001 = vpack.i.b16 %v949, %v929
      %v1002 = vshrl.u32 %v929, 16
      %v1003 = vshrl.u32 %v949, 16
      %v1004 = vpack.i.b16 %v1003, %v1002
      %v1007 = vpack.i.b16 %v989, %v969
      %v1008 = vshrl.u32 %v969, 16
      %v1009 = vshrl.u32 %v989, 16
      %v1010 = vpack.i.b16 %v1009, %v1008
      %v1013 = vpack.i.b16 %v958, %v938
      %v1014 = vshrl.u32 %v938, 16
      %v1015 = vshrl.u32 %v958, 16
      %v1016 = vpack.i.b16 %v1015, %v1014
      %v1019 = vpack.i.b16 %v998, %v978
      %v1020 = vshrl.u32 %v978, 16
      %v1021 = vshrl.u32 %v998, 16
      %v1022 = vpack.i.b16 %v1021, %v1020
      %v1025 = vunpack.c.l.s4 1983009808
      %v1026 = vunpack.c.0.s8 %v1025
      %v1027 = vperm.slane %v1001, %v1026
      %v1030 = vunpack.c.l.s4 1983009808
      %v1031 = vunpack.c.0.s8 %v1030
      %v1032 = vperm.slane %v1007, %v1031
      %v1033 = vrot.slane %v1032, 4
      %v1034 = vsel %vm219, %v1033, %v1027
      %v1035 = vrot.slane %v1027, 4
      %v1036 = vsel %vm219, %v1032, %v1035
      %v1038 = vunpack.c.l.s4 1934713408
      %v1039 = vunpack.c.0.s8 %v1038
      %v1040 = vperm.slane %v1034, %v1039
      %v1042 = vunpack.c.l.s4 1934713408
      %v1043 = vunpack.c.0.s8 %v1042
      %v1044 = vperm.slane %v1036, %v1043
      %v1045 = vrot.slane %v1040, 4
      %v1046 = vsel %vm219, 0, %v1045
      %v1047 = vrot.slane %v1044, 4
      %v1048 = vsel %vm219, 0, %v1047
      %v1051 = vunpack.c.l.s4 1983009808
      %v1052 = vunpack.c.0.s8 %v1051
      %v1053 = vperm.slane %v1004, %v1052
      %v1056 = vunpack.c.l.s4 1983009808
      %v1057 = vunpack.c.0.s8 %v1056
      %v1058 = vperm.slane %v1010, %v1057
      %v1059 = vrot.slane %v1058, 4
      %v1060 = vsel %vm219, %v1059, %v1053
      %v1061 = vrot.slane %v1053, 4
      %v1062 = vsel %vm219, %v1058, %v1061
      %v1064 = vunpack.c.l.s4 1934713408
      %v1065 = vunpack.c.0.s8 %v1064
      %v1066 = vperm.slane %v1060, %v1065
      %v1068 = vunpack.c.l.s4 1934713408
      %v1069 = vunpack.c.0.s8 %v1068
      %v1070 = vperm.slane %v1062, %v1069
      %v1071 = vrot.slane %v1066, 4
      %v1072 = vsel %vm219, 0, %v1071
      %v1073 = vrot.slane %v1070, 4
      %v1074 = vsel %vm219, 0, %v1073
      %v1077 = vunpack.c.l.s4 1983009808
      %v1078 = vunpack.c.0.s8 %v1077
      %v1079 = vperm.slane %v1013, %v1078
      %v1082 = vunpack.c.l.s4 1983009808
      %v1083 = vunpack.c.0.s8 %v1082
      %v1084 = vperm.slane %v1019, %v1083
      %v1085 = vrot.slane %v1084, 4
      %v1086 = vsel %vm219, %v1085, %v1079
      %v1087 = vrot.slane %v1079, 4
      %v1088 = vsel %vm219, %v1084, %v1087
      %v1090 = vunpack.c.l.s4 1934713408
      %v1091 = vunpack.c.0.s8 %v1090
      %v1092 = vperm.slane %v1086, %v1091
      %v1094 = vunpack.c.l.s4 1934713408
      %v1095 = vunpack.c.0.s8 %v1094
      %v1096 = vperm.slane %v1088, %v1095
      %v1097 = vrot.slane %v1092, 4
      %v1098 = vsel %vm219, 0, %v1097
      %v1099 = vrot.slane %v1096, 4
      %v1100 = vsel %vm219, 0, %v1099
      %v1103 = vunpack.c.l.s4 1983009808
      %v1104 = vunpack.c.0.s8 %v1103
      %v1105 = vperm.slane %v1016, %v1104
      %v1108 = vunpack.c.l.s4 1983009808
      %v1109 = vunpack.c.0.s8 %v1108
      %v1110 = vperm.slane %v1022, %v1109
      %v1111 = vrot.slane %v1110, 4
      %v1112 = vsel %vm219, %v1111, %v1105
      %v1113 = vrot.slane %v1105, 4
      %v1114 = vsel %vm219, %v1110, %v1113
      %v1116 = vunpack.c.l.s4 1934713408
      %v1117 = vunpack.c.0.s8 %v1116
      %v1118 = vperm.slane %v1112, %v1117
      %v1120 = vunpack.c.l.s4 1934713408
      %v1121 = vunpack.c.0.s8 %v1120
      %v1122 = vperm.slane %v1114, %v1121
      %v1123 = vrot.slane %v1118, 4
      %v1124 = vsel %vm219, 0, %v1123
      %v1125 = vrot.slane %v1122, 4
      %v1126 = vsel %vm219, 0, %v1125
      %v1128 = vunpack.c.l.b16 %v1066
      %v1129 = vpack.c.b16 %v1128, %v1128
      %1130 = vrot.lane.b32.xlu0 %v1129, 16
      %v1131 = vpop.permute.xlu0 %1130
      %v1133 = vunpack.c.l.b16 %v1046
      %v1134 = vpack.c.b16 %v1133, %v1133
      %1135 = vrot.lane.b32.xlu0 %v1134, 32
      %v1136 = vpop.permute.xlu0 %1135
      %v1138 = vunpack.c.l.b16 %v1072
      %v1139 = vpack.c.b16 %v1138, %v1138
      %1140 = vrot.lane.b32.xlu0 %v1139, 48
      %v1141 = vpop.permute.xlu0 %1140
      %v1143 = vunpack.c.l.b16 %v1044
      %v1144 = vpack.c.b16 %v1143, %v1143
      %1145 = vrot.lane.b32.xlu0 %v1144, 64
      %v1146 = vpop.permute.xlu0 %1145
      %v1148 = vunpack.c.l.b16 %v1070
      %v1149 = vpack.c.b16 %v1148, %v1148
      %1150 = vrot.lane.b32.xlu0 %v1149, 80
      %v1151 = vpop.permute.xlu0 %1150
      %v1153 = vunpack.c.l.b16 %v1048
      %v1154 = vpack.c.b16 %v1153, %v1153
      %1155 = vrot.lane.b32.xlu0 %v1154, 96
      %v1156 = vpop.permute.xlu0 %1155
      %v1158 = vunpack.c.l.b16 %v1074
      %v1159 = vpack.c.b16 %v1158, %v1158
      %1160 = vrot.lane.b32.xlu0 %v1159, 112
      %v1161 = vpop.permute.xlu0 %1160
      %v1163 = vunpack.c.l.b16 %v1118
      %v1164 = vpack.c.b16 %v1163, %v1163
      %1165 = vrot.lane.b32.xlu0 %v1164, 16
      %v1166 = vpop.permute.xlu0 %1165
      %v1168 = vunpack.c.l.b16 %v1098
      %v1169 = vpack.c.b16 %v1168, %v1168
      %1170 = vrot.lane.b32.xlu0 %v1169, 32
      %v1171 = vpop.permute.xlu0 %1170
      %v1173 = vunpack.c.l.b16 %v1124
      %v1174 = vpack.c.b16 %v1173, %v1173
      %1175 = vrot.lane.b32.xlu0 %v1174, 48
      %v1176 = vpop.permute.xlu0 %1175
      %v1178 = vunpack.c.l.b16 %v1096
      %v1179 = vpack.c.b16 %v1178, %v1178
      %1180 = vrot.lane.b32.xlu0 %v1179, 64
      %v1181 = vpop.permute.xlu0 %1180
      %v1183 = vunpack.c.l.b16 %v1122
      %v1184 = vpack.c.b16 %v1183, %v1183
      %1185 = vrot.lane.b32.xlu0 %v1184, 80
      %v1186 = vpop.permute.xlu0 %1185
      %v1188 = vunpack.c.l.b16 %v1100
      %v1189 = vpack.c.b16 %v1188, %v1188
      %1190 = vrot.lane.b32.xlu0 %v1189, 96
      %v1191 = vpop.permute.xlu0 %1190
      %v1193 = vunpack.c.l.b16 %v1126
      %v1194 = vpack.c.b16 %v1193, %v1193
      %1195 = vrot.lane.b32.xlu0 %v1194, 112
      %v1196 = vpop.permute.xlu0 %1195
      %v1199 = vsel %vm383, %v1040, %v1131
      %v1201 = vsel %vm387, %v1199, %v1136
      %v1203 = vsel %vm390, %v1201, %v1141
      %v1205 = vsel %vm393, %v1203, %v1146
      %v1207 = vsel %vm396, %v1205, %v1151
      %v1209 = vsel %vm399, %v1207, %v1156
      %v1211 = vsel %vm402, %v1209, %v1161
      %v1214 = vsel %vm383, %v1092, %v1166
      %v1216 = vsel %vm387, %v1214, %v1171
      %v1218 = vsel %vm390, %v1216, %v1176
      %v1220 = vsel %vm393, %v1218, %v1181
      %v1222 = vsel %vm396, %v1220, %v1186
      %v1224 = vsel %vm399, %v1222, %v1191
      %v1226 = vsel %vm402, %v1224, %v1196
      %1227 = vrot.lane.b32.xlu0 %v929, 127
      %v1228 = vpop.permute.xlu0 %1227
      %1229 = vrot.lane.b32.xlu0 %v938, 127
      %v1230 = vpop.permute.xlu0 %1229
      %1231 = vrot.lane.b32.xlu0 %v949, 127
      %v1232 = vpop.permute.xlu0 %1231
      %1233 = vrot.lane.b32.xlu0 %v958, 127
      %v1234 = vpop.permute.xlu0 %1233
      %1235 = vrot.lane.b32.xlu0 %v969, 127
      %v1236 = vpop.permute.xlu0 %1235
      %1237 = vrot.lane.b32.xlu0 %v978, 127
      %v1238 = vpop.permute.xlu0 %1237
      %1239 = vrot.lane.b32.xlu0 %v989, 127
      %v1240 = vpop.permute.xlu0 %1239
      %1241 = vrot.lane.b32.xlu0 %v998, 127
      %v1242 = vpop.permute.xlu0 %1241
      %v1245 = vpack.i.b16 %v1232, %v1228
      %v1246 = vshrl.u32 %v1228, 16
      %v1247 = vshrl.u32 %v1232, 16
      %v1248 = vpack.i.b16 %v1247, %v1246
      %v1251 = vpack.i.b16 %v1240, %v1236
      %v1252 = vshrl.u32 %v1236, 16
      %v1253 = vshrl.u32 %v1240, 16
      %v1254 = vpack.i.b16 %v1253, %v1252
      %v1257 = vpack.i.b16 %v1234, %v1230
      %v1258 = vshrl.u32 %v1230, 16
      %v1259 = vshrl.u32 %v1234, 16
      %v1260 = vpack.i.b16 %v1259, %v1258
      %v1263 = vpack.i.b16 %v1242, %v1238
      %v1264 = vshrl.u32 %v1238, 16
      %v1265 = vshrl.u32 %v1242, 16
      %v1266 = vpack.i.b16 %v1265, %v1264
      %v1269 = vunpack.c.l.s4 1983009808
      %v1270 = vunpack.c.0.s8 %v1269
      %v1271 = vperm.slane %v1245, %v1270
      %v1274 = vunpack.c.l.s4 1983009808
      %v1275 = vunpack.c.0.s8 %v1274
      %v1276 = vperm.slane %v1251, %v1275
      %v1277 = vrot.slane %v1276, 4
      %v1278 = vsel %vm219, %v1277, %v1271
      %v1279 = vrot.slane %v1271, 4
      %v1280 = vsel %vm219, %v1276, %v1279
      %v1282 = vunpack.c.l.s4 1934713408
      %v1283 = vunpack.c.0.s8 %v1282
      %v1284 = vperm.slane %v1278, %v1283
      %v1286 = vunpack.c.l.s4 1934713408
      %v1287 = vunpack.c.0.s8 %v1286
      %v1288 = vperm.slane %v1280, %v1287
      %v1289 = vrot.slane %v1284, 4
      %v1290 = vsel %vm219, 0, %v1289
      %v1291 = vrot.slane %v1288, 4
      %v1292 = vsel %vm219, 0, %v1291
      %v1295 = vunpack.c.l.s4 1983009808
      %v1296 = vunpack.c.0.s8 %v1295
      %v1297 = vperm.slane %v1248, %v1296
      %v1300 = vunpack.c.l.s4 1983009808
      %v1301 = vunpack.c.0.s8 %v1300
      %v1302 = vperm.slane %v1254, %v1301
      %v1303 = vrot.slane %v1302, 4
      %v1304 = vsel %vm219, %v1303, %v1297
      %v1305 = vrot.slane %v1297, 4
      %v1306 = vsel %vm219, %v1302, %v1305
      %v1308 = vunpack.c.l.s4 1934713408
      %v1309 = vunpack.c.0.s8 %v1308
      %v1310 = vperm.slane %v1304, %v1309
      %v1312 = vunpack.c.l.s4 1934713408
      %v1313 = vunpack.c.0.s8 %v1312
      %v1314 = vperm.slane %v1306, %v1313
      %v1315 = vrot.slane %v1310, 4
      %v1316 = vsel %vm219, 0, %v1315
      %v1317 = vrot.slane %v1314, 4
      %v1318 = vsel %vm219, 0, %v1317
      %v1321 = vunpack.c.l.s4 1983009808
      %v1322 = vunpack.c.0.s8 %v1321
      %v1323 = vperm.slane %v1257, %v1322
      %v1326 = vunpack.c.l.s4 1983009808
      %v1327 = vunpack.c.0.s8 %v1326
      %v1328 = vperm.slane %v1263, %v1327
      %v1329 = vrot.slane %v1328, 4
      %v1330 = vsel %vm219, %v1329, %v1323
      %v1331 = vrot.slane %v1323, 4
      %v1332 = vsel %vm219, %v1328, %v1331
      %v1334 = vunpack.c.l.s4 1934713408
      %v1335 = vunpack.c.0.s8 %v1334
      %v1336 = vperm.slane %v1330, %v1335
      %v1338 = vunpack.c.l.s4 1934713408
      %v1339 = vunpack.c.0.s8 %v1338
      %v1340 = vperm.slane %v1332, %v1339
      %v1341 = vrot.slane %v1336, 4
      %v1342 = vsel %vm219, 0, %v1341
      %v1343 = vrot.slane %v1340, 4
      %v1344 = vsel %vm219, 0, %v1343
      %v1347 = vunpack.c.l.s4 1983009808
      %v1348 = vunpack.c.0.s8 %v1347
      %v1349 = vperm.slane %v1260, %v1348
      %v1352 = vunpack.c.l.s4 1983009808
      %v1353 = vunpack.c.0.s8 %v1352
      %v1354 = vperm.slane %v1266, %v1353
      %v1355 = vrot.slane %v1354, 4
      %v1356 = vsel %vm219, %v1355, %v1349
      %v1357 = vrot.slane %v1349, 4
      %v1358 = vsel %vm219, %v1354, %v1357
      %v1360 = vunpack.c.l.s4 1934713408
      %v1361 = vunpack.c.0.s8 %v1360
      %v1362 = vperm.slane %v1356, %v1361
      %v1364 = vunpack.c.l.s4 1934713408
      %v1365 = vunpack.c.0.s8 %v1364
      %v1366 = vperm.slane %v1358, %v1365
      %v1367 = vrot.slane %v1362, 4
      %v1368 = vsel %vm219, 0, %v1367
      %v1369 = vrot.slane %v1366, 4
      %v1370 = vsel %vm219, 0, %v1369
      %v1372 = vunpack.c.l.b16 %v1310
      %v1373 = vpack.c.b16 %v1372, %v1372
      %1374 = vrot.lane.b32.xlu0 %v1373, 16
      %v1375 = vpop.permute.xlu0 %1374
      %v1377 = vunpack.c.l.b16 %v1290
      %v1378 = vpack.c.b16 %v1377, %v1377
      %1379 = vrot.lane.b32.xlu0 %v1378, 32
      %v1380 = vpop.permute.xlu0 %1379
      %v1382 = vunpack.c.l.b16 %v1316
      %v1383 = vpack.c.b16 %v1382, %v1382
      %1384 = vrot.lane.b32.xlu0 %v1383, 48
      %v1385 = vpop.permute.xlu0 %1384
      %v1387 = vunpack.c.l.b16 %v1288
      %v1388 = vpack.c.b16 %v1387, %v1387
      %1389 = vrot.lane.b32.xlu0 %v1388, 64
      %v1390 = vpop.permute.xlu0 %1389
      %v1392 = vunpack.c.l.b16 %v1314
      %v1393 = vpack.c.b16 %v1392, %v1392
      %1394 = vrot.lane.b32.xlu0 %v1393, 80
      %v1395 = vpop.permute.xlu0 %1394
      %v1397 = vunpack.c.l.b16 %v1292
      %v1398 = vpack.c.b16 %v1397, %v1397
      %1399 = vrot.lane.b32.xlu0 %v1398, 96
      %v1400 = vpop.permute.xlu0 %1399
      %v1402 = vunpack.c.l.b16 %v1318
      %v1403 = vpack.c.b16 %v1402, %v1402
      %1404 = vrot.lane.b32.xlu0 %v1403, 112
      %v1405 = vpop.permute.xlu0 %1404
      %v1407 = vunpack.c.l.b16 %v1362
      %v1408 = vpack.c.b16 %v1407, %v1407
      %1409 = vrot.lane.b32.xlu0 %v1408, 16
      %v1410 = vpop.permute.xlu0 %1409
      %v1412 = vunpack.c.l.b16 %v1342
      %v1413 = vpack.c.b16 %v1412, %v1412
      %1414 = vrot.lane.b32.xlu0 %v1413, 32
      %v1415 = vpop.permute.xlu0 %1414
      %v1417 = vunpack.c.l.b16 %v1368
      %v1418 = vpack.c.b16 %v1417, %v1417
      %1419 = vrot.lane.b32.xlu0 %v1418, 48
      %v1420 = vpop.permute.xlu0 %1419
      %v1422 = vunpack.c.l.b16 %v1340
      %v1423 = vpack.c.b16 %v1422, %v1422
      %1424 = vrot.lane.b32.xlu0 %v1423, 64
      %v1425 = vpop.permute.xlu0 %1424
      %v1427 = vunpack.c.l.b16 %v1366
      %v1428 = vpack.c.b16 %v1427, %v1427
      %1429 = vrot.lane.b32.xlu0 %v1428, 80
      %v1430 = vpop.permute.xlu0 %1429
      %v1432 = vunpack.c.l.b16 %v1344
      %v1433 = vpack.c.b16 %v1432, %v1432
      %1434 = vrot.lane.b32.xlu0 %v1433, 96
      %v1435 = vpop.permute.xlu0 %1434
      %v1437 = vunpack.c.l.b16 %v1370
      %v1438 = vpack.c.b16 %v1437, %v1437
      %1439 = vrot.lane.b32.xlu0 %v1438, 112
      %v1440 = vpop.permute.xlu0 %1439
      %v1443 = vsel %vm383, %v1284, %v1375
      %v1445 = vsel %vm387, %v1443, %v1380
      %v1447 = vsel %vm390, %v1445, %v1385
      %v1449 = vsel %vm393, %v1447, %v1390
      %v1451 = vsel %vm396, %v1449, %v1395
      %v1453 = vsel %vm399, %v1451, %v1400
      %v1455 = vsel %vm402, %v1453, %v1405
      %v1458 = vsel %vm383, %v1336, %v1410
      %v1460 = vsel %vm387, %v1458, %v1415
      %v1462 = vsel %vm390, %v1460, %v1420
      %v1464 = vsel %vm393, %v1462, %v1425
      %v1466 = vsel %vm396, %v1464, %v1430
      %v1468 = vsel %vm399, %v1466, %v1435
      %v1470 = vsel %vm402, %v1468, %v1440
      %1471 = vrot.lane.b32.xlu0 %v929, 126
      %v1472 = vpop.permute.xlu0 %1471
      %1473 = vrot.lane.b32.xlu0 %v938, 126
      %v1474 = vpop.permute.xlu0 %1473
      %1475 = vrot.lane.b32.xlu0 %v949, 126
      %v1476 = vpop.permute.xlu0 %1475
      %1477 = vrot.lane.b32.xlu0 %v958, 126
      %v1478 = vpop.permute.xlu0 %1477
      %1479 = vrot.lane.b32.xlu0 %v969, 126
      %v1480 = vpop.permute.xlu0 %1479
      %1481 = vrot.lane.b32.xlu0 %v978, 126
      %v1482 = vpop.permute.xlu0 %1481
      %1483 = vrot.lane.b32.xlu0 %v989, 126
      %v1484 = vpop.permute.xlu0 %1483
      %1485 = vrot.lane.b32.xlu0 %v998, 126
      %v1486 = vpop.permute.xlu0 %1485
      %v1489 = vpack.i.b16 %v1476, %v1472
      %v1490 = vshrl.u32 %v1472, 16
      %v1491 = vshrl.u32 %v1476, 16
      %v1492 = vpack.i.b16 %v1491, %v1490
      %v1495 = vpack.i.b16 %v1484, %v1480
      %v1496 = vshrl.u32 %v1480, 16
      %v1497 = vshrl.u32 %v1484, 16
      %v1498 = vpack.i.b16 %v1497, %v1496
      %v1501 = vpack.i.b16 %v1478, %v1474
      %v1502 = vshrl.u32 %v1474, 16
      %v1503 = vshrl.u32 %v1478, 16
      %v1504 = vpack.i.b16 %v1503, %v1502
      %v1507 = vpack.i.b16 %v1486, %v1482
      %v1508 = vshrl.u32 %v1482, 16
      %v1509 = vshrl.u32 %v1486, 16
      %v1510 = vpack.i.b16 %v1509, %v1508
      %v1513 = vunpack.c.l.s4 1983009808
      %v1514 = vunpack.c.0.s8 %v1513
      %v1515 = vperm.slane %v1489, %v1514
      %v1518 = vunpack.c.l.s4 1983009808
      %v1519 = vunpack.c.0.s8 %v1518
      %v1520 = vperm.slane %v1495, %v1519
      %v1521 = vrot.slane %v1520, 4
      %v1522 = vsel %vm219, %v1521, %v1515
      %v1523 = vrot.slane %v1515, 4
      %v1524 = vsel %vm219, %v1520, %v1523
      %v1526 = vunpack.c.l.s4 1934713408
      %v1527 = vunpack.c.0.s8 %v1526
      %v1528 = vperm.slane %v1522, %v1527
      %v1530 = vunpack.c.l.s4 1934713408
      %v1531 = vunpack.c.0.s8 %v1530
      %v1532 = vperm.slane %v1524, %v1531
      %v1533 = vrot.slane %v1528, 4
      %v1534 = vsel %vm219, 0, %v1533
      %v1535 = vrot.slane %v1532, 4
      %v1536 = vsel %vm219, 0, %v1535
      %v1539 = vunpack.c.l.s4 1983009808
      %v1540 = vunpack.c.0.s8 %v1539
      %v1541 = vperm.slane %v1492, %v1540
      %v1544 = vunpack.c.l.s4 1983009808
      %v1545 = vunpack.c.0.s8 %v1544
      %v1546 = vperm.slane %v1498, %v1545
      %v1547 = vrot.slane %v1546, 4
      %v1548 = vsel %vm219, %v1547, %v1541
      %v1549 = vrot.slane %v1541, 4
      %v1550 = vsel %vm219, %v1546, %v1549
      %v1552 = vunpack.c.l.s4 1934713408
      %v1553 = vunpack.c.0.s8 %v1552
      %v1554 = vperm.slane %v1548, %v1553
      %v1556 = vunpack.c.l.s4 1934713408
      %v1557 = vunpack.c.0.s8 %v1556
      %v1558 = vperm.slane %v1550, %v1557
      %v1559 = vrot.slane %v1554, 4
      %v1560 = vsel %vm219, 0, %v1559
      %v1561 = vrot.slane %v1558, 4
      %v1562 = vsel %vm219, 0, %v1561
      %v1565 = vunpack.c.l.s4 1983009808
      %v1566 = vunpack.c.0.s8 %v1565
      %v1567 = vperm.slane %v1501, %v1566
      %v1570 = vunpack.c.l.s4 1983009808
      %v1571 = vunpack.c.0.s8 %v1570
      %v1572 = vperm.slane %v1507, %v1571
      %v1573 = vrot.slane %v1572, 4
      %v1574 = vsel %vm219, %v1573, %v1567
      %v1575 = vrot.slane %v1567, 4
      %v1576 = vsel %vm219, %v1572, %v1575
      %v1578 = vunpack.c.l.s4 1934713408
      %v1579 = vunpack.c.0.s8 %v1578
      %v1580 = vperm.slane %v1574, %v1579
      %v1582 = vunpack.c.l.s4 1934713408
      %v1583 = vunpack.c.0.s8 %v1582
      %v1584 = vperm.slane %v1576, %v1583
      %v1585 = vrot.slane %v1580, 4
      %v1586 = vsel %vm219, 0, %v1585
      %v1587 = vrot.slane %v1584, 4
      %v1588 = vsel %vm219, 0, %v1587
      %v1591 = vunpack.c.l.s4 1983009808
      %v1592 = vunpack.c.0.s8 %v1591
      %v1593 = vperm.slane %v1504, %v1592
      %v1596 = vunpack.c.l.s4 1983009808
      %v1597 = vunpack.c.0.s8 %v1596
      %v1598 = vperm.slane %v1510, %v1597
      %v1599 = vrot.slane %v1598, 4
      %v1600 = vsel %vm219, %v1599, %v1593
      %v1601 = vrot.slane %v1593, 4
      %v1602 = vsel %vm219, %v1598, %v1601
      %v1604 = vunpack.c.l.s4 1934713408
      %v1605 = vunpack.c.0.s8 %v1604
      %v1606 = vperm.slane %v1600, %v1605
      %v1608 = vunpack.c.l.s4 1934713408
      %v1609 = vunpack.c.0.s8 %v1608
      %v1610 = vperm.slane %v1602, %v1609
      %v1611 = vrot.slane %v1606, 4
      %v1612 = vsel %vm219, 0, %v1611
      %v1613 = vrot.slane %v1610, 4
      %v1614 = vsel %vm219, 0, %v1613
      %v1616 = vunpack.c.l.b16 %v1554
      %v1617 = vpack.c.b16 %v1616, %v1616
      %1618 = vrot.lane.b32.xlu0 %v1617, 16
      %v1619 = vpop.permute.xlu0 %1618
      %v1621 = vunpack.c.l.b16 %v1534
      %v1622 = vpack.c.b16 %v1621, %v1621
      %1623 = vrot.lane.b32.xlu0 %v1622, 32
      %v1624 = vpop.permute.xlu0 %1623
      %v1626 = vunpack.c.l.b16 %v1560
      %v1627 = vpack.c.b16 %v1626, %v1626
      %1628 = vrot.lane.b32.xlu0 %v1627, 48
      %v1629 = vpop.permute.xlu0 %1628
      %v1631 = vunpack.c.l.b16 %v1532
      %v1632 = vpack.c.b16 %v1631, %v1631
      %1633 = vrot.lane.b32.xlu0 %v1632, 64
      %v1634 = vpop.permute.xlu0 %1633
      %v1636 = vunpack.c.l.b16 %v1558
      %v1637 = vpack.c.b16 %v1636, %v1636
      %1638 = vrot.lane.b32.xlu0 %v1637, 80
      %v1639 = vpop.permute.xlu0 %1638
      %v1641 = vunpack.c.l.b16 %v1536
      %v1642 = vpack.c.b16 %v1641, %v1641
      %1643 = vrot.lane.b32.xlu0 %v1642, 96
      %v1644 = vpop.permute.xlu0 %1643
      %v1646 = vunpack.c.l.b16 %v1562
      %v1647 = vpack.c.b16 %v1646, %v1646
      %1648 = vrot.lane.b32.xlu0 %v1647, 112
      %v1649 = vpop.permute.xlu0 %1648
      %v1651 = vunpack.c.l.b16 %v1606
      %v1652 = vpack.c.b16 %v1651, %v1651
      %1653 = vrot.lane.b32.xlu0 %v1652, 16
      %v1654 = vpop.permute.xlu0 %1653
      %v1656 = vunpack.c.l.b16 %v1586
      %v1657 = vpack.c.b16 %v1656, %v1656
      %1658 = vrot.lane.b32.xlu0 %v1657, 32
      %v1659 = vpop.permute.xlu0 %1658
      %v1661 = vunpack.c.l.b16 %v1612
      %v1662 = vpack.c.b16 %v1661, %v1661
      %1663 = vrot.lane.b32.xlu0 %v1662, 48
      %v1664 = vpop.permute.xlu0 %1663
      %v1666 = vunpack.c.l.b16 %v1584
      %v1667 = vpack.c.b16 %v1666, %v1666
      %1668 = vrot.lane.b32.xlu0 %v1667, 64
      %v1669 = vpop.permute.xlu0 %1668
      %v1671 = vunpack.c.l.b16 %v1610
      %v1672 = vpack.c.b16 %v1671, %v1671
      %1673 = vrot.lane.b32.xlu0 %v1672, 80
      %v1674 = vpop.permute.xlu0 %1673
      %v1676 = vunpack.c.l.b16 %v1588
      %v1677 = vpack.c.b16 %v1676, %v1676
      %1678 = vrot.lane.b32.xlu0 %v1677, 96
      %v1679 = vpop.permute.xlu0 %1678
      %v1681 = vunpack.c.l.b16 %v1614
      %v1682 = vpack.c.b16 %v1681, %v1681
      %1683 = vrot.lane.b32.xlu0 %v1682, 112
      %v1684 = vpop.permute.xlu0 %1683
      %v1687 = vsel %vm383, %v1528, %v1619
      %v1689 = vsel %vm387, %v1687, %v1624
      %v1691 = vsel %vm390, %v1689, %v1629
      %v1693 = vsel %vm393, %v1691, %v1634
      %v1695 = vsel %vm396, %v1693, %v1639
      %v1697 = vsel %vm399, %v1695, %v1644
      %v1699 = vsel %vm402, %v1697, %v1649
      %v1702 = vsel %vm383, %v1580, %v1654
      %v1704 = vsel %vm387, %v1702, %v1659
      %v1706 = vsel %vm390, %v1704, %v1664
      %v1708 = vsel %vm393, %v1706, %v1669
      %v1710 = vsel %vm396, %v1708, %v1674
      %v1712 = vsel %vm399, %v1710, %v1679
      %v1714 = vsel %vm402, %v1712, %v1684
      %vm1719 = vcmask 1042432
      %vm1720 = vcmask 1046532
      %vm1721 = vmor %vm1719, %vm1720
      %v1722 = vrot.slane %v172, 5
      %v1723 = vrot.slane %v1722, 4
      %v1724 = vrot.slane %v173, 5
      %v1725 = vsel %vm1721, %v1723, %v1724
      %v1726 = vrot.slane %v1724, 4
      %v1727 = vrot.slane %v174, 5
      %v1728 = vsel %vm1721, %v1726, %v1727
      %v1729 = vrot.slane %v175, 5
      %v1730 = vrot.slane %v1729, 4
      %v1731 = vrot.slane %v176, 5
      %v1732 = vsel %vm1721, %v1730, %v1731
      %v1733 = vrot.slane %v1731, 4
      %v1734 = vrot.slane %v177, 5
      %v1735 = vsel %vm1721, %v1733, %v1734
      %v1736 = vrot.slane %v178, 5
      %v1737 = vrot.slane %v1736, 4
      %v1738 = vrot.slane %v179, 5
      %v1739 = vsel %vm1721, %v1737, %v1738
      %v1740 = vrot.slane %v1738, 4
      %v1741 = vrot.slane %v180, 5
      %v1742 = vsel %vm1721, %v1740, %v1741
      %v1743 = vrot.slane %v181, 5
      %v1744 = vrot.slane %v1743, 4
      %v1745 = vrot.slane %v182, 5
      %v1746 = vsel %vm1721, %v1744, %v1745
      %v1747 = vrot.slane %v1745, 4
      %v1748 = vrot.slane %v183, 5
      %v1749 = vsel %vm1721, %v1747, %v1748
      %v1752 = vpack.i.b16 %v1732, %v1725
      %v1753 = vshrl.u32 %v1725, 16
      %v1754 = vshrl.u32 %v1732, 16
      %v1755 = vpack.i.b16 %v1754, %v1753
      %v1758 = vpack.i.b16 %v1746, %v1739
      %v1759 = vshrl.u32 %v1739, 16
      %v1760 = vshrl.u32 %v1746, 16
      %v1761 = vpack.i.b16 %v1760, %v1759
      %v1764 = vpack.i.b16 %v1735, %v1728
      %v1765 = vshrl.u32 %v1728, 16
      %v1766 = vshrl.u32 %v1735, 16
      %v1767 = vpack.i.b16 %v1766, %v1765
      %v1770 = vpack.i.b16 %v1749, %v1742
      %v1771 = vshrl.u32 %v1742, 16
      %v1772 = vshrl.u32 %v1749, 16
      %v1773 = vpack.i.b16 %v1772, %v1771
      %v1776 = vunpack.c.l.s4 1983009808
      %v1777 = vunpack.c.0.s8 %v1776
      %v1778 = vperm.slane %v1752, %v1777
      %v1781 = vunpack.c.l.s4 1983009808
      %v1782 = vunpack.c.0.s8 %v1781
      %v1783 = vperm.slane %v1758, %v1782
      %v1784 = vrot.slane %v1783, 4
      %v1785 = vsel %vm219, %v1784, %v1778
      %v1786 = vrot.slane %v1778, 4
      %v1787 = vsel %vm219, %v1783, %v1786
      %v1789 = vunpack.c.l.s4 1934713408
      %v1790 = vunpack.c.0.s8 %v1789
      %v1791 = vperm.slane %v1785, %v1790
      %v1793 = vunpack.c.l.s4 1934713408
      %v1794 = vunpack.c.0.s8 %v1793
      %v1795 = vperm.slane %v1787, %v1794
      %v1796 = vrot.slane %v1791, 4
      %v1797 = vsel %vm219, 0, %v1796
      %v1798 = vrot.slane %v1795, 4
      %v1799 = vsel %vm219, 0, %v1798
      %v1802 = vunpack.c.l.s4 1983009808
      %v1803 = vunpack.c.0.s8 %v1802
      %v1804 = vperm.slane %v1755, %v1803
      %v1807 = vunpack.c.l.s4 1983009808
      %v1808 = vunpack.c.0.s8 %v1807
      %v1809 = vperm.slane %v1761, %v1808
      %v1810 = vrot.slane %v1809, 4
      %v1811 = vsel %vm219, %v1810, %v1804
      %v1812 = vrot.slane %v1804, 4
      %v1813 = vsel %vm219, %v1809, %v1812
      %v1815 = vunpack.c.l.s4 1934713408
      %v1816 = vunpack.c.0.s8 %v1815
      %v1817 = vperm.slane %v1811, %v1816
      %v1819 = vunpack.c.l.s4 1934713408
      %v1820 = vunpack.c.0.s8 %v1819
      %v1821 = vperm.slane %v1813, %v1820
      %v1822 = vrot.slane %v1817, 4
      %v1823 = vsel %vm219, 0, %v1822
      %v1824 = vrot.slane %v1821, 4
      %v1825 = vsel %vm219, 0, %v1824
      %v1828 = vunpack.c.l.s4 1983009808
      %v1829 = vunpack.c.0.s8 %v1828
      %v1830 = vperm.slane %v1764, %v1829
      %v1833 = vunpack.c.l.s4 1983009808
      %v1834 = vunpack.c.0.s8 %v1833
      %v1835 = vperm.slane %v1770, %v1834
      %v1836 = vrot.slane %v1835, 4
      %v1837 = vsel %vm219, %v1836, %v1830
      %v1838 = vrot.slane %v1830, 4
      %v1839 = vsel %vm219, %v1835, %v1838
      %v1841 = vunpack.c.l.s4 1934713408
      %v1842 = vunpack.c.0.s8 %v1841
      %v1843 = vperm.slane %v1837, %v1842
      %v1845 = vunpack.c.l.s4 1934713408
      %v1846 = vunpack.c.0.s8 %v1845
      %v1847 = vperm.slane %v1839, %v1846
      %v1848 = vrot.slane %v1843, 4
      %v1849 = vsel %vm219, 0, %v1848
      %v1850 = vrot.slane %v1847, 4
      %v1851 = vsel %vm219, 0, %v1850
      %v1854 = vunpack.c.l.s4 1983009808
      %v1855 = vunpack.c.0.s8 %v1854
      %v1856 = vperm.slane %v1767, %v1855
      %v1859 = vunpack.c.l.s4 1983009808
      %v1860 = vunpack.c.0.s8 %v1859
      %v1861 = vperm.slane %v1773, %v1860
      %v1862 = vrot.slane %v1861, 4
      %v1863 = vsel %vm219, %v1862, %v1856
      %v1864 = vrot.slane %v1856, 4
      %v1865 = vsel %vm219, %v1861, %v1864
      %v1867 = vunpack.c.l.s4 1934713408
      %v1868 = vunpack.c.0.s8 %v1867
      %v1869 = vperm.slane %v1863, %v1868
      %v1871 = vunpack.c.l.s4 1934713408
      %v1872 = vunpack.c.0.s8 %v1871
      %v1873 = vperm.slane %v1865, %v1872
      %v1874 = vrot.slane %v1869, 4
      %v1875 = vsel %vm219, 0, %v1874
      %v1876 = vrot.slane %v1873, 4
      %v1877 = vsel %vm219, 0, %v1876
      %v1879 = vunpack.c.l.b16 %v1817
      %v1880 = vpack.c.b16 %v1879, %v1879
      %1881 = vrot.lane.b32.xlu0 %v1880, 16
      %v1882 = vpop.permute.xlu0 %1881
      %v1884 = vunpack.c.l.b16 %v1797
      %v1885 = vpack.c.b16 %v1884, %v1884
      %1886 = vrot.lane.b32.xlu0 %v1885, 32
      %v1887 = vpop.permute.xlu0 %1886
      %v1889 = vunpack.c.l.b16 %v1823
      %v1890 = vpack.c.b16 %v1889, %v1889
      %1891 = vrot.lane.b32.xlu0 %v1890, 48
      %v1892 = vpop.permute.xlu0 %1891
      %v1894 = vunpack.c.l.b16 %v1795
      %v1895 = vpack.c.b16 %v1894, %v1894
      %1896 = vrot.lane.b32.xlu0 %v1895, 64
      %v1897 = vpop.permute.xlu0 %1896
      %v1899 = vunpack.c.l.b16 %v1821
      %v1900 = vpack.c.b16 %v1899, %v1899
      %1901 = vrot.lane.b32.xlu0 %v1900, 80
      %v1902 = vpop.permute.xlu0 %1901
      %v1904 = vunpack.c.l.b16 %v1799
      %v1905 = vpack.c.b16 %v1904, %v1904
      %1906 = vrot.lane.b32.xlu0 %v1905, 96
      %v1907 = vpop.permute.xlu0 %1906
      %v1909 = vunpack.c.l.b16 %v1825
      %v1910 = vpack.c.b16 %v1909, %v1909
      %1911 = vrot.lane.b32.xlu0 %v1910, 112
      %v1912 = vpop.permute.xlu0 %1911
      %v1914 = vunpack.c.l.b16 %v1869
      %v1915 = vpack.c.b16 %v1914, %v1914
      %1916 = vrot.lane.b32.xlu0 %v1915, 16
      %v1917 = vpop.permute.xlu0 %1916
      %v1919 = vunpack.c.l.b16 %v1849
      %v1920 = vpack.c.b16 %v1919, %v1919
      %1921 = vrot.lane.b32.xlu0 %v1920, 32
      %v1922 = vpop.permute.xlu0 %1921
      %v1924 = vunpack.c.l.b16 %v1875
      %v1925 = vpack.c.b16 %v1924, %v1924
      %1926 = vrot.lane.b32.xlu0 %v1925, 48
      %v1927 = vpop.permute.xlu0 %1926
      %v1929 = vunpack.c.l.b16 %v1847
      %v1930 = vpack.c.b16 %v1929, %v1929
      %1931 = vrot.lane.b32.xlu0 %v1930, 64
      %v1932 = vpop.permute.xlu0 %1931
      %v1934 = vunpack.c.l.b16 %v1873
      %v1935 = vpack.c.b16 %v1934, %v1934
      %1936 = vrot.lane.b32.xlu0 %v1935, 80
      %v1937 = vpop.permute.xlu0 %1936
      %v1939 = vunpack.c.l.b16 %v1851
      %v1940 = vpack.c.b16 %v1939, %v1939
      %1941 = vrot.lane.b32.xlu0 %v1940, 96
      %v1942 = vpop.permute.xlu0 %1941
      %v1944 = vunpack.c.l.b16 %v1877
      %v1945 = vpack.c.b16 %v1944, %v1944
      %1946 = vrot.lane.b32.xlu0 %v1945, 112
      %v1947 = vpop.permute.xlu0 %1946
      %v1950 = vsel %vm383, %v1791, %v1882
      %v1952 = vsel %vm387, %v1950, %v1887
      %v1954 = vsel %vm390, %v1952, %v1892
      %v1956 = vsel %vm393, %v1954, %v1897
      %v1958 = vsel %vm396, %v1956, %v1902
      %v1960 = vsel %vm399, %v1958, %v1907
      %v1962 = vsel %vm402, %v1960, %v1912
      %v1965 = vsel %vm383, %v1843, %v1917
      %v1967 = vsel %vm387, %v1965, %v1922
      %v1969 = vsel %vm390, %v1967, %v1927
      %v1971 = vsel %vm393, %v1969, %v1932
      %v1973 = vsel %vm396, %v1971, %v1937
      %v1975 = vsel %vm399, %v1973, %v1942
      %v1977 = vsel %vm402, %v1975, %v1947
      %1978 = vrot.lane.b32.xlu0 %v1725, 127
      %v1979 = vpop.permute.xlu0 %1978
      %1980 = vrot.lane.b32.xlu0 %v1728, 127
      %v1981 = vpop.permute.xlu0 %1980
      %1982 = vrot.lane.b32.xlu0 %v1732, 127
      %v1983 = vpop.permute.xlu0 %1982
      %1984 = vrot.lane.b32.xlu0 %v1735, 127
      %v1985 = vpop.permute.xlu0 %1984
      %1986 = vrot.lane.b32.xlu0 %v1739, 127
      %v1987 = vpop.permute.xlu0 %1986
      %1988 = vrot.lane.b32.xlu0 %v1742, 127
      %v1989 = vpop.permute.xlu0 %1988
      %1990 = vrot.lane.b32.xlu0 %v1746, 127
      %v1991 = vpop.permute.xlu0 %1990
      %1992 = vrot.lane.b32.xlu0 %v1749, 127
      %v1993 = vpop.permute.xlu0 %1992
      %v1996 = vpack.i.b16 %v1983, %v1979
      %v1997 = vshrl.u32 %v1979, 16
      %v1998 = vshrl.u32 %v1983, 16
      %v1999 = vpack.i.b16 %v1998, %v1997
      %v2002 = vpack.i.b16 %v1991, %v1987
      %v2003 = vshrl.u32 %v1987, 16
      %v2004 = vshrl.u32 %v1991, 16
      %v2005 = vpack.i.b16 %v2004, %v2003
      %v2008 = vpack.i.b16 %v1985, %v1981
      %v2009 = vshrl.u32 %v1981, 16
      %v2010 = vshrl.u32 %v1985, 16
      %v2011 = vpack.i.b16 %v2010, %v2009
      %v2014 = vpack.i.b16 %v1993, %v1989
      %v2015 = vshrl.u32 %v1989, 16
      %v2016 = vshrl.u32 %v1993, 16
      %v2017 = vpack.i.b16 %v2016, %v2015
      %v2020 = vunpack.c.l.s4 1983009808
      %v2021 = vunpack.c.0.s8 %v2020
      %v2022 = vperm.slane %v1996, %v2021
      %v2025 = vunpack.c.l.s4 1983009808
      %v2026 = vunpack.c.0.s8 %v2025
      %v2027 = vperm.slane %v2002, %v2026
      %v2028 = vrot.slane %v2027, 4
      %v2029 = vsel %vm219, %v2028, %v2022
      %v2030 = vrot.slane %v2022, 4
      %v2031 = vsel %vm219, %v2027, %v2030
      %v2033 = vunpack.c.l.s4 1934713408
      %v2034 = vunpack.c.0.s8 %v2033
      %v2035 = vperm.slane %v2029, %v2034
      %v2037 = vunpack.c.l.s4 1934713408
      %v2038 = vunpack.c.0.s8 %v2037
      %v2039 = vperm.slane %v2031, %v2038
      %v2040 = vrot.slane %v2035, 4
      %v2041 = vsel %vm219, 0, %v2040
      %v2042 = vrot.slane %v2039, 4
      %v2043 = vsel %vm219, 0, %v2042
      %v2046 = vunpack.c.l.s4 1983009808
      %v2047 = vunpack.c.0.s8 %v2046
      %v2048 = vperm.slane %v1999, %v2047
      %v2051 = vunpack.c.l.s4 1983009808
      %v2052 = vunpack.c.0.s8 %v2051
      %v2053 = vperm.slane %v2005, %v2052
      %v2054 = vrot.slane %v2053, 4
      %v2055 = vsel %vm219, %v2054, %v2048
      %v2056 = vrot.slane %v2048, 4
      %v2057 = vsel %vm219, %v2053, %v2056
      %v2059 = vunpack.c.l.s4 1934713408
      %v2060 = vunpack.c.0.s8 %v2059
      %v2061 = vperm.slane %v2055, %v2060
      %v2063 = vunpack.c.l.s4 1934713408
      %v2064 = vunpack.c.0.s8 %v2063
      %v2065 = vperm.slane %v2057, %v2064
      %v2066 = vrot.slane %v2061, 4
      %v2067 = vsel %vm219, 0, %v2066
      %v2068 = vrot.slane %v2065, 4
      %v2069 = vsel %vm219, 0, %v2068
      %v2072 = vunpack.c.l.s4 1983009808
      %v2073 = vunpack.c.0.s8 %v2072
      %v2074 = vperm.slane %v2008, %v2073
      %v2077 = vunpack.c.l.s4 1983009808
      %v2078 = vunpack.c.0.s8 %v2077
      %v2079 = vperm.slane %v2014, %v2078
      %v2080 = vrot.slane %v2079, 4
      %v2081 = vsel %vm219, %v2080, %v2074
      %v2082 = vrot.slane %v2074, 4
      %v2083 = vsel %vm219, %v2079, %v2082
      %v2085 = vunpack.c.l.s4 1934713408
      %v2086 = vunpack.c.0.s8 %v2085
      %v2087 = vperm.slane %v2081, %v2086
      %v2089 = vunpack.c.l.s4 1934713408
      %v2090 = vunpack.c.0.s8 %v2089
      %v2091 = vperm.slane %v2083, %v2090
      %v2092 = vrot.slane %v2087, 4
      %v2093 = vsel %vm219, 0, %v2092
      %v2094 = vrot.slane %v2091, 4
      %v2095 = vsel %vm219, 0, %v2094
      %v2098 = vunpack.c.l.s4 1983009808
      %v2099 = vunpack.c.0.s8 %v2098
      %v2100 = vperm.slane %v2011, %v2099
      %v2103 = vunpack.c.l.s4 1983009808
      %v2104 = vunpack.c.0.s8 %v2103
      %v2105 = vperm.slane %v2017, %v2104
      %v2106 = vrot.slane %v2105, 4
      %v2107 = vsel %vm219, %v2106, %v2100
      %v2108 = vrot.slane %v2100, 4
      %v2109 = vsel %vm219, %v2105, %v2108
      %v2111 = vunpack.c.l.s4 1934713408
      %v2112 = vunpack.c.0.s8 %v2111
      %v2113 = vperm.slane %v2107, %v2112
      %v2115 = vunpack.c.l.s4 1934713408
      %v2116 = vunpack.c.0.s8 %v2115
      %v2117 = vperm.slane %v2109, %v2116
      %v2118 = vrot.slane %v2113, 4
      %v2119 = vsel %vm219, 0, %v2118
      %v2120 = vrot.slane %v2117, 4
      %v2121 = vsel %vm219, 0, %v2120
      %v2123 = vunpack.c.l.b16 %v2061
      %v2124 = vpack.c.b16 %v2123, %v2123
      %2125 = vrot.lane.b32.xlu0 %v2124, 16
      %v2126 = vpop.permute.xlu0 %2125
      %v2128 = vunpack.c.l.b16 %v2041
      %v2129 = vpack.c.b16 %v2128, %v2128
      %2130 = vrot.lane.b32.xlu0 %v2129, 32
      %v2131 = vpop.permute.xlu0 %2130
      %v2133 = vunpack.c.l.b16 %v2067
      %v2134 = vpack.c.b16 %v2133, %v2133
      %2135 = vrot.lane.b32.xlu0 %v2134, 48
      %v2136 = vpop.permute.xlu0 %2135
      %v2138 = vunpack.c.l.b16 %v2039
      %v2139 = vpack.c.b16 %v2138, %v2138
      %2140 = vrot.lane.b32.xlu0 %v2139, 64
      %v2141 = vpop.permute.xlu0 %2140
      %v2143 = vunpack.c.l.b16 %v2065
      %v2144 = vpack.c.b16 %v2143, %v2143
      %2145 = vrot.lane.b32.xlu0 %v2144, 80
      %v2146 = vpop.permute.xlu0 %2145
      %v2148 = vunpack.c.l.b16 %v2043
      %v2149 = vpack.c.b16 %v2148, %v2148
      %2150 = vrot.lane.b32.xlu0 %v2149, 96
      %v2151 = vpop.permute.xlu0 %2150
      %v2153 = vunpack.c.l.b16 %v2069
      %v2154 = vpack.c.b16 %v2153, %v2153
      %2155 = vrot.lane.b32.xlu0 %v2154, 112
      %v2156 = vpop.permute.xlu0 %2155
      %v2158 = vunpack.c.l.b16 %v2113
      %v2159 = vpack.c.b16 %v2158, %v2158
      %2160 = vrot.lane.b32.xlu0 %v2159, 16
      %v2161 = vpop.permute.xlu0 %2160
      %v2163 = vunpack.c.l.b16 %v2093
      %v2164 = vpack.c.b16 %v2163, %v2163
      %2165 = vrot.lane.b32.xlu0 %v2164, 32
      %v2166 = vpop.permute.xlu0 %2165
      %v2168 = vunpack.c.l.b16 %v2119
      %v2169 = vpack.c.b16 %v2168, %v2168
      %2170 = vrot.lane.b32.xlu0 %v2169, 48
      %v2171 = vpop.permute.xlu0 %2170
      %v2173 = vunpack.c.l.b16 %v2091
      %v2174 = vpack.c.b16 %v2173, %v2173
      %2175 = vrot.lane.b32.xlu0 %v2174, 64
      %v2176 = vpop.permute.xlu0 %2175
      %v2178 = vunpack.c.l.b16 %v2117
      %v2179 = vpack.c.b16 %v2178, %v2178
      %2180 = vrot.lane.b32.xlu0 %v2179, 80
      %v2181 = vpop.permute.xlu0 %2180
      %v2183 = vunpack.c.l.b16 %v2095
      %v2184 = vpack.c.b16 %v2183, %v2183
      %2185 = vrot.lane.b32.xlu0 %v2184, 96
      %v2186 = vpop.permute.xlu0 %2185
      %v2188 = vunpack.c.l.b16 %v2121
      %v2189 = vpack.c.b16 %v2188, %v2188
      %2190 = vrot.lane.b32.xlu0 %v2189, 112
      %v2191 = vpop.permute.xlu0 %2190
      %v2194 = vsel %vm383, %v2035, %v2126
      %v2196 = vsel %vm387, %v2194, %v2131
      %v2198 = vsel %vm390, %v2196, %v2136
      %v2200 = vsel %vm393, %v2198, %v2141
      %v2202 = vsel %vm396, %v2200, %v2146
      %v2204 = vsel %vm399, %v2202, %v2151
      %v2206 = vsel %vm402, %v2204, %v2156
      %v2209 = vsel %vm383, %v2087, %v2161
      %v2211 = vsel %vm387, %v2209, %v2166
      %v2213 = vsel %vm390, %v2211, %v2171
      %v2215 = vsel %vm393, %v2213, %v2176
      %v2217 = vsel %vm396, %v2215, %v2181
      %v2219 = vsel %vm399, %v2217, %v2186
      %v2221 = vsel %vm402, %v2219, %v2191
      %2222 = vrot.lane.b32.xlu0 %v1725, 126
      %v2223 = vpop.permute.xlu0 %2222
      %2224 = vrot.lane.b32.xlu0 %v1728, 126
      %v2225 = vpop.permute.xlu0 %2224
      %2226 = vrot.lane.b32.xlu0 %v1732, 126
      %v2227 = vpop.permute.xlu0 %2226
      %2228 = vrot.lane.b32.xlu0 %v1735, 126
      %v2229 = vpop.permute.xlu0 %2228
      %2230 = vrot.lane.b32.xlu0 %v1739, 126
      %v2231 = vpop.permute.xlu0 %2230
      %2232 = vrot.lane.b32.xlu0 %v1742, 126
      %v2233 = vpop.permute.xlu0 %2232
      %2234 = vrot.lane.b32.xlu0 %v1746, 126
      %v2235 = vpop.permute.xlu0 %2234
      %2236 = vrot.lane.b32.xlu0 %v1749, 126
      %v2237 = vpop.permute.xlu0 %2236
      %v2240 = vpack.i.b16 %v2227, %v2223
      %v2241 = vshrl.u32 %v2223, 16
      %v2242 = vshrl.u32 %v2227, 16
      %v2243 = vpack.i.b16 %v2242, %v2241
      %v2246 = vpack.i.b16 %v2235, %v2231
      %v2247 = vshrl.u32 %v2231, 16
      %v2248 = vshrl.u32 %v2235, 16
      %v2249 = vpack.i.b16 %v2248, %v2247
      %v2252 = vpack.i.b16 %v2229, %v2225
      %v2253 = vshrl.u32 %v2225, 16
      %v2254 = vshrl.u32 %v2229, 16
      %v2255 = vpack.i.b16 %v2254, %v2253
      %v2258 = vpack.i.b16 %v2237, %v2233
      %v2259 = vshrl.u32 %v2233, 16
      %v2260 = vshrl.u32 %v2237, 16
      %v2261 = vpack.i.b16 %v2260, %v2259
      %v2264 = vunpack.c.l.s4 1983009808
      %v2265 = vunpack.c.0.s8 %v2264
      %v2266 = vperm.slane %v2240, %v2265
      %v2269 = vunpack.c.l.s4 1983009808
      %v2270 = vunpack.c.0.s8 %v2269
      %v2271 = vperm.slane %v2246, %v2270
      %v2272 = vrot.slane %v2271, 4
      %v2273 = vsel %vm219, %v2272, %v2266
      %v2274 = vrot.slane %v2266, 4
      %v2275 = vsel %vm219, %v2271, %v2274
      %v2277 = vunpack.c.l.s4 1934713408
      %v2278 = vunpack.c.0.s8 %v2277
      %v2279 = vperm.slane %v2273, %v2278
      %v2281 = vunpack.c.l.s4 1934713408
      %v2282 = vunpack.c.0.s8 %v2281
      %v2283 = vperm.slane %v2275, %v2282
      %v2284 = vrot.slane %v2279, 4
      %v2285 = vsel %vm219, 0, %v2284
      %v2286 = vrot.slane %v2283, 4
      %v2287 = vsel %vm219, 0, %v2286
      %v2290 = vunpack.c.l.s4 1983009808
      %v2291 = vunpack.c.0.s8 %v2290
      %v2292 = vperm.slane %v2243, %v2291
      %v2295 = vunpack.c.l.s4 1983009808
      %v2296 = vunpack.c.0.s8 %v2295
      %v2297 = vperm.slane %v2249, %v2296
      %v2298 = vrot.slane %v2297, 4
      %v2299 = vsel %vm219, %v2298, %v2292
      %v2300 = vrot.slane %v2292, 4
      %v2301 = vsel %vm219, %v2297, %v2300
      %v2303 = vunpack.c.l.s4 1934713408
      %v2304 = vunpack.c.0.s8 %v2303
      %v2305 = vperm.slane %v2299, %v2304
      %v2307 = vunpack.c.l.s4 1934713408
      %v2308 = vunpack.c.0.s8 %v2307
      %v2309 = vperm.slane %v2301, %v2308
      %v2310 = vrot.slane %v2305, 4
      %v2311 = vsel %vm219, 0, %v2310
      %v2312 = vrot.slane %v2309, 4
      %v2313 = vsel %vm219, 0, %v2312
      %v2316 = vunpack.c.l.s4 1983009808
      %v2317 = vunpack.c.0.s8 %v2316
      %v2318 = vperm.slane %v2252, %v2317
      %v2321 = vunpack.c.l.s4 1983009808
      %v2322 = vunpack.c.0.s8 %v2321
      %v2323 = vperm.slane %v2258, %v2322
      %v2324 = vrot.slane %v2323, 4
      %v2325 = vsel %vm219, %v2324, %v2318
      %v2326 = vrot.slane %v2318, 4
      %v2327 = vsel %vm219, %v2323, %v2326
      %v2329 = vunpack.c.l.s4 1934713408
      %v2330 = vunpack.c.0.s8 %v2329
      %v2331 = vperm.slane %v2325, %v2330
      %v2333 = vunpack.c.l.s4 1934713408
      %v2334 = vunpack.c.0.s8 %v2333
      %v2335 = vperm.slane %v2327, %v2334
      %v2336 = vrot.slane %v2331, 4
      %v2337 = vsel %vm219, 0, %v2336
      %v2338 = vrot.slane %v2335, 4
      %v2339 = vsel %vm219, 0, %v2338
      %v2342 = vunpack.c.l.s4 1983009808
      %v2343 = vunpack.c.0.s8 %v2342
      %v2344 = vperm.slane %v2255, %v2343
      %v2347 = vunpack.c.l.s4 1983009808
      %v2348 = vunpack.c.0.s8 %v2347
      %v2349 = vperm.slane %v2261, %v2348
      %v2350 = vrot.slane %v2349, 4
      %v2351 = vsel %vm219, %v2350, %v2344
      %v2352 = vrot.slane %v2344, 4
      %v2353 = vsel %vm219, %v2349, %v2352
      %v2355 = vunpack.c.l.s4 1934713408
      %v2356 = vunpack.c.0.s8 %v2355
      %v2357 = vperm.slane %v2351, %v2356
      %v2359 = vunpack.c.l.s4 1934713408
      %v2360 = vunpack.c.0.s8 %v2359
      %v2361 = vperm.slane %v2353, %v2360
      %v2362 = vrot.slane %v2357, 4
      %v2363 = vsel %vm219, 0, %v2362
      %v2364 = vrot.slane %v2361, 4
      %v2365 = vsel %vm219, 0, %v2364
      %v2367 = vunpack.c.l.b16 %v2305
      %v2368 = vpack.c.b16 %v2367, %v2367
      %2369 = vrot.lane.b32.xlu0 %v2368, 16
      %v2370 = vpop.permute.xlu0 %2369
      %v2372 = vunpack.c.l.b16 %v2285
      %v2373 = vpack.c.b16 %v2372, %v2372
      %2374 = vrot.lane.b32.xlu0 %v2373, 32
      %v2375 = vpop.permute.xlu0 %2374
      %v2377 = vunpack.c.l.b16 %v2311
      %v2378 = vpack.c.b16 %v2377, %v2377
      %2379 = vrot.lane.b32.xlu0 %v2378, 48
      %v2380 = vpop.permute.xlu0 %2379
      %v2382 = vunpack.c.l.b16 %v2283
      %v2383 = vpack.c.b16 %v2382, %v2382
      %2384 = vrot.lane.b32.xlu0 %v2383, 64
      %v2385 = vpop.permute.xlu0 %2384
      %v2387 = vunpack.c.l.b16 %v2309
      %v2388 = vpack.c.b16 %v2387, %v2387
      %2389 = vrot.lane.b32.xlu0 %v2388, 80
      %v2390 = vpop.permute.xlu0 %2389
      %v2392 = vunpack.c.l.b16 %v2287
      %v2393 = vpack.c.b16 %v2392, %v2392
      %2394 = vrot.lane.b32.xlu0 %v2393, 96
      %v2395 = vpop.permute.xlu0 %2394
      %v2397 = vunpack.c.l.b16 %v2313
      %v2398 = vpack.c.b16 %v2397, %v2397
      %2399 = vrot.lane.b32.xlu0 %v2398, 112
      %v2400 = vpop.permute.xlu0 %2399
      %v2402 = vunpack.c.l.b16 %v2357
      %v2403 = vpack.c.b16 %v2402, %v2402
      %2404 = vrot.lane.b32.xlu0 %v2403, 16
      %v2405 = vpop.permute.xlu0 %2404
      %v2407 = vunpack.c.l.b16 %v2337
      %v2408 = vpack.c.b16 %v2407, %v2407
      %2409 = vrot.lane.b32.xlu0 %v2408, 32
      %v2410 = vpop.permute.xlu0 %2409
      %v2412 = vunpack.c.l.b16 %v2363
      %v2413 = vpack.c.b16 %v2412, %v2412
      %2414 = vrot.lane.b32.xlu0 %v2413, 48
      %v2415 = vpop.permute.xlu0 %2414
      %v2417 = vunpack.c.l.b16 %v2335
      %v2418 = vpack.c.b16 %v2417, %v2417
      %2419 = vrot.lane.b32.xlu0 %v2418, 64
      %v2420 = vpop.permute.xlu0 %2419
      %v2422 = vunpack.c.l.b16 %v2361
      %v2423 = vpack.c.b16 %v2422, %v2422
      %2424 = vrot.lane.b32.xlu0 %v2423, 80
      %v2425 = vpop.permute.xlu0 %2424
      %v2427 = vunpack.c.l.b16 %v2339
      %v2428 = vpack.c.b16 %v2427, %v2427
      %2429 = vrot.lane.b32.xlu0 %v2428, 96
      %v2430 = vpop.permute.xlu0 %2429
      %v2432 = vunpack.c.l.b16 %v2365
      %v2433 = vpack.c.b16 %v2432, %v2432
      %2434 = vrot.lane.b32.xlu0 %v2433, 112
      %v2435 = vpop.permute.xlu0 %2434
      %v2438 = vsel %vm383, %v2279, %v2370
      %v2440 = vsel %vm387, %v2438, %v2375
      %v2442 = vsel %vm390, %v2440, %v2380
      %v2444 = vsel %vm393, %v2442, %v2385
      %v2446 = vsel %vm396, %v2444, %v2390
      %v2448 = vsel %vm399, %v2446, %v2395
      %v2450 = vsel %vm402, %v2448, %v2400
      %v2453 = vsel %vm383, %v2331, %v2405
      %v2455 = vsel %vm387, %v2453, %v2410
      %v2457 = vsel %vm390, %v2455, %v2415
      %v2459 = vsel %vm393, %v2457, %v2420
      %v2461 = vsel %vm396, %v2459, %v2425
      %v2463 = vsel %vm399, %v2461, %v2430
      %v2465 = vsel %vm402, %v2463, %v2435
      %v2468 = vrot.slane %v656, 6
      %v2469 = vrot.slane %v671, 6
      %v2472 = vrot.slane %v900, 4
      %v2473 = vrot.slane %v915, 4
      %v2476 = vrot.slane %v1211, 2
      %v2477 = vrot.slane %v1226, 2
      %v2480 = vrot.slane %v1699, 6
      %v2481 = vrot.slane %v1714, 6
      %v2484 = vrot.slane %v1962, 4
      %v2485 = vrot.slane %v1977, 4
      %v2488 = vrot.slane %v2206, 2
      %v2489 = vrot.slane %v2221, 2
      %vm2490 = vcmask 1041408
      %v2492 = vsel %vm2490, %v404, %v2468
      %v2494 = vsel %vm2490, %v419, %v2469
      %vm2495 = vcmask 1043456
      %v2497 = vsel %vm2495, %v2492, %v2472
      %v2499 = vsel %vm2495, %v2494, %v2473
      %vm2500 = vcmask 1045504
      %v2502 = vsel %vm2500, %v2497, %v2476
      %v2505 = vsel %vm2500, %v2499, %v2477
      %v2508 = vsel %vm2490, %v1455, %v2480
      %v2510 = vsel %vm2490, %v1470, %v2481
      %v2512 = vsel %vm2495, %v2508, %v2484
      %v2514 = vsel %vm2495, %v2510, %v2485
      %v2516 = vsel %vm2500, %v2512, %v2488
      %v2519 = vsel %vm2500, %v2514, %v2489
      %v2521 = vld [vmem:[%s1] sm:$0xf]
      %v2522 = vld [vmem:[%s1 + $0x4] sm:$0xf]
      %v2523 = vld [vmem:[%s2] sm:$0xff]
      %v2524 = vld [vmem:[%s2 + $0x8] sm:$0xff]
      %2526 = vset.pattern.permute.xlu0 0
      %2527 = vperm.xlu0 %2526, %v2523
      %v2528 = vpop.permute.xlu0 %2527
      %2531 = vset.pattern.permute.xlu0 0
      %2532 = vperm.xlu0 %2531, %v2524
      %v2533 = vpop.permute.xlu0 %2532
      %v2537 = vunpack.c.l.b16 %v2521
      %v2538 = vunpack.c.l.b16 %v2522
      %v2539 = vpack.c.b16 %v2538, %v2537
      %vm2540 = vcmask 293888
      %v2542 = vsel %vm2540, %v2539, 0
      %v2544 = vsel %vm2490, %v2450, 0
      %v2546 = vsel %vm2490, %v2465, 0
      %2548 = vmatpush.bf16.msra.mxu0 0
      %2549 = vmatpush.bf16.msra.mxu0 0
      %2550 = vmatpush.bf16.msra.mxu0 0
      %2551 = vmatpush.bf16.msra.mxu0 0
      %2552 = vmatpush.bf16.msra.mxu0 0
      %2553 = vmatpush.bf16.msra.mxu0 %v2544
      %2554 = vmatpush.bf16.msra.mxu0 %v2516
      %2555 = vmatpush.bf16.msra.mxu0 %v2502
      %2556 = vmatmul.bf16.gmra.mxu0 %v2542
      %v2557 = vpop.f32.mrf.mxu0
      %v2558 = vadd.f32 %v2528, %v2557
      %v2559 = vpop.f32.mrf.mxu0
      %v2560 = vadd.f32 %v2533, %v2559
      %2561 = vdwg.mxu0
      %2562 = vmatpush.bf16.msra.mxu0 0
      %2563 = vmatpush.bf16.msra.mxu0 0
      %2564 = vmatpush.bf16.msra.mxu0 0
      %2565 = vmatpush.bf16.msra.mxu0 0
      %2566 = vmatpush.bf16.msra.mxu0 0
      %2567 = vmatpush.bf16.msra.mxu0 %v2546
      %2568 = vmatpush.bf16.msra.mxu0 %v2519
      %2569 = vmatpush.bf16.msra.mxu0 %v2505
      %2570 = vmatmul.bf16.gmra.mxu0 %v2542
      %v2571 = vpop.f32.mrf.mxu0
      %v2572 = vadd.f32 %v2528, %v2571
      %v2573 = vpop.f32.mrf.mxu0
      %v2574 = vadd.f32 %v2533, %v2573
      %2575 = vdwg.mxu0
      %v2576 = vmax.f32 %v2558, 0.0
      %v2577 = vmax.f32 %v2572, 0.0
      %v2578 = vxor.u32 %v2560, 2147483648
      %v2579 = vxor.u32 %v2574, 2147483648
      %v2580 = vmul.f32 %v2578, 1.442695
      %v2581 = vpow.pop %v2580
      %v2582 = vmul.f32 %v2579, 1.442695
      %v2583 = vpow.pop %v2582
      %v2584 = vadd.f32 %v2581, 1.0
      %v2585 = vadd.f32 %v2583, 1.0
      %v2586 = vrcp.pop %v2584
      %v2587 = vmul.f32 %v2584, %v2586
      %v2588 = vsub.f32 1.0, %v2587
      %v2589 = vmul.f32 %v2586, %v2588
      %v2590 = vadd.f32 %v2586, %v2589
      %vm2591 = vweird.f32 %v2584
      %vm2592 = vweird.f32 %v2586
      %vm2593 = vmor %vm2591, %vm2592
      %v2594 = vsel %vm2593, %v2586, %v2590
      %v2595 = vand.u32 2147483647, %v2584
      %vm2596 = vcmp.eq.f32.partialorder %v2595, 8.507059e+37
      %v2597 = vand.u32 %v2584, 2147483648
      %v2598 = vor.u32 1.1754944e-38, %v2597
      %v2599 = vsel %vm2596, %v2598, %v2594
      %v2600 = vmul.f32 1.0, %v2599
      %v2601 = vrcp.pop %v2585
      %v2602 = vmul.f32 %v2585, %v2601
      %v2603 = vsub.f32 1.0, %v2602
      %v2604 = vmul.f32 %v2601, %v2603
      %v2605 = vadd.f32 %v2601, %v2604
      %vm2606 = vweird.f32 %v2585
      %vm2607 = vweird.f32 %v2601
      %vm2608 = vmor %vm2606, %vm2607
      %v2609 = vsel %vm2608, %v2601, %v2605
      %v2610 = vand.u32 2147483647, %v2585
      %vm2611 = vcmp.eq.f32.partialorder %v2610, 8.507059e+37
      %v2612 = vand.u32 %v2585, 2147483648
      %v2613 = vor.u32 1.1754944e-38, %v2612
      %v2614 = vsel %vm2611, %v2613, %v2609
      %v2615 = vmul.f32 1.0, %v2614
      %v2616 = vmul.f32 %v2576, %v2600
      %v2617 = vmul.f32 %v2577, %v2615
      %2618 = vst [vmem:[%s170] sm:$0xff] %v2616
      %2619 = vst [vmem:[%s170 + $0x8] sm:$0xff] %v2617
      %p2620 = scmp.lt.s32.totalorder %s14, 1
      %s2621 = scalar_select %p2620, %s14, 1
      %s2622 = smul.addr %s2621, 2
      %s2623 = smul.addr %s2622, 8
      %s2624 = scalar_lea.vmem %s3, %s2623
      // Predicated region
      $region33: #{conv2d_gated_relu.1} parent=31 // pred_check
        %p2625 = pneg %p100
      $region34: #{conv2d_gated_relu.1} parent=31 // pred_check_branch
        %2627 = sbr.rel (%p2625) target = $region36
      $region35: #{conv2d_gated_relu.1} parent=31 // pred_region
        _
      $region36: #{conv2d_gated_relu.1} parent=31 // pred_fallthru
        _
    $region32: #{conv2d_gated_relu.1} parent=5 // pred_fallthru
      _
    %p2628 = scmp.le.s32.totalorder 2, %s9
    // Predicated region
    $region37: #{conv2d_gated_relu.1} parent=5 // pred_check
      %p2629 = pneg %p2628
    $region38: #{conv2d_gated_relu.1} parent=5 // pred_check_branch
      %2631 = sbr.rel (%p2629) target = $region40
    $region39: #{conv2d_gated_relu.1} parent=5 // pred_region
      %s2632 = ssub.s32 %s9, 2
      // Predicated region
      $region41: #{conv2d_gated_relu.1} parent=39 // pred_check
        %p2633 = pneg %p106
      $region42: #{conv2d_gated_relu.1} parent=39 // pred_check_branch
        %2635 = sbr.rel (%p2633) target = $region44
      $region43: #{conv2d_gated_relu.1} parent=39 // pred_region
        %p2636 = scmp.lt.s32.totalorder %s15, 1
        %s2637 = scalar_select %p2636, %s15, 1
        %s2638 = smul.addr %s2637, 2
        %s2639 = smul.addr %s2638, 8
        %s2640 = scalar_lea.vmem %s3, %s2639
      $region44: #{conv2d_gated_relu.1} parent=39 // pred_fallthru
        _
    $region40: #{conv2d_gated_relu.1} parent=5 // pred_fallthru
      _
  $region6: #{conv2d_gated_relu.1} parent=0 // loop_footer
    %s13 = sadd.s32 1, %s9
  $region7: #{conv2d_gated_relu.1} parent=0 // loop_footer_branch
    %8 = sbr.rel target = $region3
  $region8: #{conv2d_gated_relu.1} parent=0 // loop_exit
    _

</llo_original>
